<compile_context>
chip_gen: v6e
topology: v6e:2x2x1
jax: 0.10.0
libtpu: 0.0.40
codegen_flags: <defaults>
</compile_context>

<pallas_src>
import functools

import jax
import jax.numpy as jnp
from jax import lax
from jax.experimental import pallas as pl
from jax.experimental.pallas import tpu as pltpu

ACT_DTYPE = jnp.bfloat16            # activation / matmul-input dtype (f32 accumulation)
LANE = 128                          # channel padding granularity
SUBLANE = 16                        # bf16 packs 2 rows/sublane -> 16-row alignment
OUT_ROWS = 16                       # rows emitted by the final (head-feeding) block
VMEM_LIMIT_BYTES = 64 * 1024 * 1024  # explicit scoped-VMEM budget (v7x-safe, < 64 MiB phys)


def _round_up(x, m):
    return ((x + m - 1) // m) * m


@functools.lru_cache(maxsize=None)
def _single_buffer_weights_supported() -> bool:
    """Probe once whether pl.Buffered(1) (single-buffered constant operands) works."""
    def _copy(x_ref, o_ref):
        o_ref[...] = x_ref[...]
    try:
        out = pl.pallas_call(
            _copy,
            out_shape=jax.ShapeDtypeStruct((8, 128), jnp.float32),
            grid=(1,),
            in_specs=[pl.BlockSpec((8, 128), lambda i: (0, 0),
                                   pipeline_mode=pl.Buffered(1))],
            out_specs=pl.BlockSpec((8, 128), lambda i: (0, 0)),
        )(jnp.zeros((8, 128), jnp.float32))
        jax.block_until_ready(out)
        return True
    except Exception:   # kwarg missing or lowering rejects buffer_count=1 -> default 2
        return False


# ----------------------------------------------------------------------------
# Fused TemporalBlock kernel
# ----------------------------------------------------------------------------
def _temporal_block_kernel(x_ref, w1_ref, b1_ref, w2_ref, b2_ref, *rest,
                           kernel_size, dilation, tile_l, has_downsample, emit):
    """One (batch, L-tile) step of a fused TemporalBlock.

    x_ref : (TL, Cin_p)         input tile (bf16, channels zero-padded)
    w1_ref: (K, Cin_p, Cout_p)  conv1 taps        b1_ref: (1, Cout_p) f32
    w2_ref: (K, Cout_p, Cout_p) conv2 taps        b2_ref: (1, Cout_p) f32
    [wd_ref: (Cin_p, Cout_p), bd_ref: (1, Cout_p)]  1x1 downsample (optional)
    o_ref : (TL, Cout_p) full output, or (OUT_ROWS, Cout_p) when emit != None
    xwin_ref: (halo + TL, Cin_p)  persistent input window  (carries x halo)
    hwin_ref: (halo + TL, Cout_p) persistent conv1-activation window (h halo)
    emit  : None, or (t_last, r0) -> only write rows [r0, r0+OUT_ROWS) of the
            t_last tile (final layer; avoids a full activation HBM write).
    """
    if has_downsample:
        wd_ref, bd_ref, o_ref, xwin_ref, hwin_ref = rest
    else:
        o_ref, xwin_ref, hwin_ref = rest

    K, d = kernel_size, dilation
    pad = d * (K - 1)                 # causal padding of each conv
    halo = _round_up(pad, SUBLANE)    # 16-row aligned halo slot (bf16 sublane pack)
    TL = tile_l
    t = pl.program_id(1)

    if pad > 0:
        @pl.when(t == 0)
        def _zero_halo():             # causal padding: x[<0] == 0 and h[<0] == 0
            xwin_ref[pl.ds(0, halo), :] = jnp.zeros(
                (halo, xwin_ref.shape[1]), xwin_ref.dtype)
            hwin_ref[pl.ds(0, halo), :] = jnp.zeros(
                (halo, hwin_ref.shape[1]), hwin_ref.dtype)

        @pl.when(t != 0)
        def _carry_halo():            # aligned, non-overlapping (TL >= halo) carry
            xwin_ref[pl.ds(0, halo), :] = xwin_ref[pl.ds(TL, halo), :]
            hwin_ref[pl.ds(0, halo), :] = hwin_ref[pl.ds(TL, halo), :]

    # new input tile into the window: window row halo + r  ==  x[t*TL + r]
    xwin_ref[pl.ds(halo, TL), :] = x_ref[...]

    # ---- conv1 + bias + ReLU  (dropout1 = identity at eval) ----------------
    c_mid = w1_ref.shape[2]
    acc1 = jnp.zeros((TL, c_mid), jnp.float32)
    for j in range(K):                # K static 128-deep MXU matmuls (v5e-native)
        xs = xwin_ref[pl.ds(halo - pad + j * d, TL), :]
        acc1 = acc1 + jnp.dot(xs, w1_ref[j], preferred_element_type=jnp.float32)
    h_tile = jnp.maximum(acc1 + b1_ref[...], 0.0)
    # bf16 window for MXU-friendly conv2 input (one extra rounding vs f32 torch path)
    hwin_ref[pl.ds(halo, TL), :] = h_tile.astype(hwin_ref.dtype)

    # ---- conv2 + bias + ReLU  (dropout2 = identity at eval) ----------------
    c_out = w2_ref.shape[2]
    acc2 = jnp.zeros((TL, c_out), jnp.float32)
    for j in range(K):
        hs = hwin_ref[pl.ds(halo - pad + j * d, TL), :]
        acc2 = acc2 + jnp.dot(hs, w2_ref[j], preferred_element_type=jnp.float32)
    out = jnp.maximum(acc2 + b2_ref[...], 0.0)

    # ---- residual + final ReLU ---------------------------------------------
    xr = x_ref[...]
    if has_downsample:
        res = jnp.dot(xr, wd_ref[...],
                      preferred_element_type=jnp.float32) + bd_ref[...]
    else:
        res = xr.astype(jnp.float32)
    y = jnp.maximum(out + res, 0.0)

    if emit is None:
        o_ref[...] = y.astype(o_ref.dtype)
    else:
        t_last, r0 = emit
        @pl.when(t == t_last)
        def _emit_last_rows():        # only the slab containing t = L-1 leaves VMEM
            o_ref[...] = y[r0:r0 + OUT_ROWS, :].astype(o_ref.dtype)


def _temporal_block(x, layer, *, kernel_size, dilation, tile_l,
                    last_only=False, seq_len=None):
    """x: (B, Lp, Cin_p) bf16, channels-last.

    Returns (B, Lp, Cout_p) bf16, or (B, OUT_ROWS, Cout_p) when last_only.
    """
    B, Lp, cin_p = x.shape
    K = kernel_size
    w1, b1, w2, b2 = layer["w1"], layer["b1"], layer["w2"], layer["b2"]
    cout_p = w1.shape[2]
    has_ds = "wd" in layer
    pad = dilation * (K - 1)
    halo = _round_up(pad, SUBLANE)
    TL = tile_l
    assert Lp % TL == 0 and TL % SUBLANE == 0
    T = Lp // TL
    assert T == 1 or TL >= halo, "tile must cover the halo carry (TL >= halo)"

    if last_only:
        r_last = (seq_len - 1) % TL
        emit = ((seq_len - 1) // TL, (r_last // OUT_ROWS) * OUT_ROWS)
        out_shape = jax.ShapeDtypeStruct((B, OUT_ROWS, cout_p), x.dtype)
        out_spec = pl.BlockSpec((pl.Squeezed(), OUT_ROWS, cout_p),
                                lambda b, t: (b, 0, 0))
    else:
        emit = None
        out_shape = jax.ShapeDtypeStruct((B, Lp, cout_p), x.dtype)
        out_spec = pl.BlockSpec((pl.Squeezed(), TL, cout_p),
                                lambda b, t: (b, t, 0))

    single_buf = _single_buffer_weights_supported()

    def const_spec(shape):            # weights/biases: block index never changes
        imap = lambda b, t, _n=len(shape): (0,) * _n
        if single_buf:
            return pl.BlockSpec(shape, imap, pipeline_mode=pl.Buffered(1))
        return pl.BlockSpec(shape, imap)

    in_specs = [
        pl.BlockSpec((pl.Squeezed(), TL, cin_p), lambda b, t: (b, t, 0)),
        const_spec((K, cin_p, cout_p)),
        const_spec((1, cout_p)),
        const_spec((K, cout_p, cout_p)),
        const_spec((1, cout_p)),
    ]
    args = [x, w1, b1, w2, b2]
    if has_ds:
        in_specs += [const_spec((cin_p, cout_p)), const_spec((1, cout_p))]
        args += [layer["wd"], layer["bd"]]

    kern = functools.partial(_temporal_block_kernel, kernel_size=K,
                             dilation=dilation, tile_l=TL,
                             has_downsample=has_ds, emit=emit)

    return pl.pallas_call(
        kern,
        out_shape=out_shape,
        grid=(B, T),
        in_specs=in_specs,
        out_specs=out_spec,
        scratch_shapes=[pltpu.VMEM((halo + TL, cin_p), x.dtype),
                        pltpu.VMEM((halo + TL, cout_p), x.dtype)],
        compiler_params=pltpu.CompilerParams(
            dimension_semantics=("parallel", "arbitrary"),
            vmem_limit_bytes=VMEM_LIMIT_BYTES),
    )(*args)


# ----------------------------------------------------------------------------
# Linear head + log_softmax kernel (tiny; whole arrays in VMEM)
# ----------------------------------------------------------------------------
def _head_kernel(f_ref, w_ref, b_ref, o_ref):
    logits = jnp.dot(f_ref[...], w_ref[...],
                     preferred_element_type=jnp.float32) + b_ref[...]
    m = jnp.max(logits, axis=1, keepdims=True)
    z = logits - m
    lse = jnp.log(jnp.sum(jnp.exp(z), axis=1, keepdims=True))
    o_ref[...] = (z - lse).astype(o_ref.dtype)


def _linear_log_softmax(feat, w, b):
    """feat: (B, Cp) bf16, w: (Cp, n_out) bf16, b: (1, n_out) f32 -> (B, n_out) f32."""
    B = feat.shape[0]
    n_out = w.shape[1]
    return pl.pallas_call(
        _head_kernel,
        out_shape=jax.ShapeDtypeStruct((B, n_out), jnp.float32),
    )(feat, w, b)


# ----------------------------------------------------------------------------
# Parameter preparation (done once, outside the per-call path)
# ----------------------------------------------------------------------------
def _weight_norm(v, g):
    """PyTorch weight_norm (dim=0): w = g * v / ||v|| over (in, k) per out-ch."""
    norm = jnp.sqrt(jnp.sum(v * v, axis=(1, 2), keepdims=True))
    return g[:, None, None] * v / norm


def _pad_to(a, shape):
    return jnp.pad(a, [(0, s - d) for d, s in zip(a.shape, shape)])


def prepare_tcn_params(raw):
    """Weight-norm, transpose to (K, Cin, Cout), zero-pad channels to 128, cast."""
    levels = []
    for lp in raw["levels"]:
        c_out, c_in, K = lp["v1"].shape
        cin_p, cout_p = _round_up(c_in, LANE), _round_up(c_out, LANE)
        w1 = jnp.transpose(_weight_norm(lp["v1"], lp["g1"]), (2, 1, 0))
        w2 = jnp.transpose(_weight_norm(lp["v2"], lp["g2"]), (2, 1, 0))
        lay = dict(
            w1=_pad_to(w1, (K, cin_p, cout_p)).astype(ACT_DTYPE),
            b1=_pad_to(lp["b1"][None, :], (1, cout_p)).astype(jnp.float32),
            w2=_pad_to(w2, (K, cout_p, cout_p)).astype(ACT_DTYPE),
            b2=_pad_to(lp["b2"][None, :], (1, cout_p)).astype(jnp.float32),
        )
        if "wd" in lp:
            wd = jnp.transpose(lp["wd"], (1, 0))                 # (Cin, Cout)
            lay["wd"] = _pad_to(wd, (cin_p, cout_p)).astype(ACT_DTYPE)
            lay["bd"] = _pad_to(lp["bd"][None, :], (1, cout_p)).astype(jnp.float32)
        levels.append(lay)
    c_last = raw["lin_w"].shape[1]
    clast_p = _round_up(c_last, LANE)
    lin_w = _pad_to(jnp.transpose(raw["lin_w"], (1, 0)),
                    (clast_p, raw["lin_w"].shape[0]))
    return dict(levels=levels,
                lin_w=lin_w.astype(ACT_DTYPE),
                lin_b=raw["lin_b"][None, :].astype(jnp.float32))


def init_tcn_params(key, input_size, output_size, num_channels, kernel_size):
    keys = jax.random.split(key, 8 * len(num_channels) + 2)
    levels, ki = [], 0
    for i, c_out in enumerate(num_channels):
        c_in = input_size if i == 0 else num_channels[i - 1]
        v1 = 0.01 * jax.random.normal(keys[ki], (c_out, c_in, kernel_size), jnp.float32); ki += 1
        g1 = 0.5 + jnp.abs(jax.random.normal(keys[ki], (c_out,), jnp.float32)); ki += 1
        b1 = 0.1 * jax.random.uniform(keys[ki], (c_out,), jnp.float32, -1.0, 1.0); ki += 1
        v2 = 0.01 * jax.random.normal(keys[ki], (c_out, c_out, kernel_size), jnp.float32); ki += 1
        g2 = 0.5 + jnp.abs(jax.random.normal(keys[ki], (c_out,), jnp.float32)); ki += 1
        b2 = 0.1 * jax.random.uniform(keys[ki], (c_out,), jnp.float32, -1.0, 1.0); ki += 1
        lp = dict(v1=v1, g1=g1, b1=b1, v2=v2, g2=g2, b2=b2)
        if c_in != c_out:
            lp["wd"] = 0.01 * jax.random.normal(keys[ki], (c_out, c_in), jnp.float32)
            lp["bd"] = 0.1 * jax.random.uniform(keys[ki + 1], (c_out,), jnp.float32, -1.0, 1.0)
        ki += 2
        levels.append(lp)
    lin_w = 0.01 * jax.random.normal(keys[ki], (output_size, num_channels[-1]), jnp.float32)
    lin_b = 0.1 * jax.random.uniform(keys[ki + 1], (output_size,), jnp.float32, -1.0, 1.0)
    return dict(levels=levels, lin_w=lin_w, lin_b=lin_b)


# ----------------------------------------------------------------------------
# TCN forward (wrapper)
# ----------------------------------------------------------------------------
def tcn_forward(x_ncl, params, *, kernel_size, tile_l=512):
    """x_ncl: (B, input_size, L) PyTorch NCL layout -> (B, output_size) log-probs."""
    B, c_in, L = x_ncl.shape
    n_levels = len(params["levels"])
    max_pad = (kernel_size - 1) * (2 ** (n_levels - 1))

    # single L-tile size for the whole stack: 16-aligned, no larger than needed,
    # and (when multi-tile) at least the deepest layer's halo.
    TL = min(_round_up(tile_l, SUBLANE), _round_up(L, SUBLANE))
    if TL < _round_up(L, SUBLANE):
        TL = max(TL, _round_up(max_pad, SUBLANE))
    Lp = _round_up(L, TL)

    cin_p = params["levels"][0]["w1"].shape[1]
    h = jnp.transpose(x_ncl, (0, 2, 1))                          # NCL -> NLC, once
    h = jnp.pad(h, ((0, 0), (0, Lp - L), (0, cin_p - c_in))).astype(ACT_DTYPE)

    for i, layer in enumerate(params["levels"]):
        last = i == n_levels - 1
        h = _temporal_block(h, layer, kernel_size=kernel_size, dilation=2 ** i,
                            tile_l=TL, last_only=last, seq_len=L)
    # final block emitted only an OUT_ROWS slab containing sequence position L-1
    feat = h[:, ((L - 1) % TL) % OUT_ROWS, :]
    return _linear_log_softmax(feat, params["lin_w"], params["lin_b"])


# ----------------------------------------------------------------------------
# Pure-JAX reference (float32), mirrors the PyTorch module exactly
# ----------------------------------------------------------------------------
def tcn_reference(x_ncl, raw, *, kernel_size):
    dn = ("NCH", "OIH", "NCH")
    h = x_ncl
    for i, lp in enumerate(raw["levels"]):
        d = 2 ** i
        p = (kernel_size - 1) * d
        w1 = _weight_norm(lp["v1"], lp["g1"])
        w2 = _weight_norm(lp["v2"], lp["g2"])

        def conv(x, w, b):
            y = lax.conv_general_dilated(x, w, window_strides=(1,),
                                         padding=[(p, p)], rhs_dilation=(d,),
                                         dimension_numbers=dn)
            return y + b[None, :, None]

        o = jnp.maximum(conv(h, w1, lp["b1"])[:, :, :-p], 0.0)    # chomp1, relu1
        o = jnp.maximum(conv(o, w2, lp["b2"])[:, :, :-p], 0.0)    # chomp2, relu2
        if "wd" in lp:
            res = jnp.einsum("oc,bcl->bol", lp["wd"], h) + lp["bd"][None, :, None]
        else:
            res = h
        h = jnp.maximum(o + res, 0.0)
    logits = h[:, :, -1] @ raw["lin_w"].T + raw["lin_b"]
    return jax.nn.log_softmax(logits, axis=1)


# ----------------------------------------------------------------------------
if __name__ == "__main__":
    # small shapes: batch=2, input_size=4, 3 TCN levels of 8 channels, seq=48
    B, INPUT_SIZE, OUTPUT_SIZE, L = 2, 4, 5, 48
    NUM_CHANNELS = (8, 8, 8)      # level 0: 4->8 (downsample), levels 1-2: identity
    K = 3
    TILE_L = 16                   # 3 L-tiles -> exercises both in-kernel halo carries

    key = jax.random.PRNGKey(0)
    k_x, k_p = jax.random.split(key)
    x = jax.random.normal(k_x, (B, INPUT_SIZE, L), jnp.float32)   # PyTorch NCL input
    raw = init_tcn_params(k_p, INPUT_SIZE, OUTPUT_SIZE, NUM_CHANNELS, K)
    params = prepare_tcn_params(raw)

    out = tcn_forward(x, params, kernel_size=K, tile_l=TILE_L)
    out = jax.block_until_ready(out)

    ref = tcn_reference(x, raw, kernel_size=K)
    assert out.shape == (B, OUTPUT_SIZE), out.shape
    err = float(jnp.max(jnp.abs(out - ref)))
    assert err < 3e-2, f"max abs err {err}"      # bf16 activations vs f32 reference
    print("KERNEL_OK")
</pallas_src>

<mosaic_0001>
module attributes {stable_mosaic.version = 11 : i64} {
  func.func @_copy(%arg0: i32, %arg1: memref<8x128xf32, #tpu.memory_space<vmem>>, %arg2: memref<8x128xf32, #tpu.memory_space<vmem>>) attributes {dimension_semantics = [#tpu.dimension_semantics<arbitrary>], iteration_bounds = array<i64: 1>, scalar_prefetch = 0 : i64, scratch_operands = 0 : i64, tpu.core_type = #tpu.core_type<tc>, window_params = [{pipeline_mode = #tpu.pipeline_mode<synchronous>, transform_indices = @transform_0, window_bounds = array<i64: 8, 128>}, {pipeline_mode = #tpu.pipeline_mode<synchronous>, transform_indices = @transform_1, window_bounds = array<i64: 8, 128>}]} {
    %c0 = arith.constant 0 : index
    %c0_0 = arith.constant 0 : index
    %0 = vector.load %arg1[%c0, %c0_0] : memref<8x128xf32, #tpu.memory_space<vmem>>, vector<8x128xf32>
    %c0_1 = arith.constant 0 : index
    %c0_2 = arith.constant 0 : index
    %1 = vector.load %arg2[%c0_1, %c0_2] : memref<8x128xf32, #tpu.memory_space<vmem>>, vector<8x128xf32>
    tpu.vector_store %arg2[%c0_1, %c0_2], %0 {strides = array<i32>} : memref<8x128xf32, #tpu.memory_space<vmem>>, vector<8x128xf32>,
    return
  }
  func.func @transform_0(%arg0: i32) -> (i32, i32) {
    %c0_i32 = arith.constant 0 : i32
    %c0_i32_0 = arith.constant 0 : i32
    %c0_i32_1 = arith.constant 0 : i32
    return %c0_i32, %c0_i32_0 : i32, i32
  }
  func.func @transform_1(%arg0: i32) -> (i32, i32) {
    %c0_i32 = arith.constant 0 : i32
    %c0_i32_0 = arith.constant 0 : i32
    %c0_i32_1 = arith.constant 0 : i32
    return %c0_i32, %c0_i32_0 : i32, i32
  }
}

module attributes {stable_mosaic.version = 11 : i64} {
  func.func @_temporal_block_kernel(%arg0: i32, %arg1: i32, %arg2: memref<1x16x128xbf16, #tpu.memory_space<vmem>>, %arg3: memref<3x128x128xbf16, #tpu.memory_space<vmem>>, %arg4: memref<1x128xf32, #tpu.memory_space<vmem>>, %arg5: memref<3x128x128xbf16, #tpu.memory_space<vmem>>, %arg6: memref<1x128xf32, #tpu.memory_space<vmem>>, %arg7: memref<128x128xbf16, #tpu.memory_space<vmem>>, %arg8: memref<1x128xf32, #tpu.memory_space<vmem>>, %arg9: memref<1x16x128xbf16, #tpu.memory_space<vmem>>, %arg10: memref<32x128xbf16, #tpu.memory_space<vmem>>, %arg11: memref<32x128xbf16, #tpu.memory_space<vmem>>) attributes {dimension_semantics = [#tpu.dimension_semantics<parallel>, #tpu.dimension_semantics<arbitrary>], iteration_bounds = array<i64: 2, 3>, scalar_prefetch = 0 : i64, scratch_operands = 2 : i64, tpu.core_type = #tpu.core_type<tc>, window_params = [{transform_indices = @transform_0, window_bounds = array<i64: 1, 16, 128>}, {pipeline_mode = #tpu.pipeline_mode<synchronous>, transform_indices = @transform_1, window_bounds = array<i64: 3, 128, 128>}, {pipeline_mode = #tpu.pipeline_mode<synchronous>, transform_indices = @transform_2, window_bounds = array<i64: 1, 128>}, {pipeline_mode = #tpu.pipeline_mode<synchronous>, transform_indices = @transform_3, window_bounds = array<i64: 3, 128, 128>}, {pipeline_mode = #tpu.pipeline_mode<synchronous>, transform_indices = @transform_4, window_bounds = array<i64: 1, 128>}, {pipeline_mode = #tpu.pipeline_mode<synchronous>, transform_indices = @transform_5, window_bounds = array<i64: 128, 128>}, {pipeline_mode = #tpu.pipeline_mode<synchronous>, transform_indices = @transform_6, window_bounds = array<i64: 1, 128>}, {transform_indices = @transform_7, window_bounds = array<i64: 1, 16, 128>}]} {
    %c0_i32 = arith.constant 0 : i32
    %0 = arith.cmpi eq, %arg1, %c0_i32 : i32
    %1 = arith.extui %0 : i1 to i32
    %c0_i32_0 = arith.constant 0 : i32
    %2 = arith.cmpi ne, %1, %c0_i32_0 : i32
    scf.if %2 {
      %cst_59 = arith.constant 0.000000e+00 : bf16
      %67 = vector.broadcast %cst_59 : bf16 to vector<16x128xbf16>
      %c0_60 = arith.constant 0 : index
      %c0_61 = arith.constant 0 : index
      %68 = vector.load %arg10[%c0_60, %c0_61] : memref<32x128xbf16, #tpu.memory_space<vmem>>, vector<16x128xbf16>
      tpu.vector_store %arg10[%c0_60, %c0_61], %67 {strides = array<i32>} : memref<32x128xbf16, #tpu.memory_space<vmem>>, vector<16x128xbf16>,
      %cst_62 = arith.constant 0.000000e+00 : bf16
      %69 = vector.broadcast %cst_62 : bf16 to vector<16x128xbf16>
      %c0_63 = arith.constant 0 : index
      %c0_64 = arith.constant 0 : index
      %70 = vector.load %arg11[%c0_63, %c0_64] : memref<32x128xbf16, #tpu.memory_space<vmem>>, vector<16x128xbf16>
      tpu.vector_store %arg11[%c0_63, %c0_64], %69 {strides = array<i32>} : memref<32x128xbf16, #tpu.memory_space<vmem>>, vector<16x128xbf16>,
    } else {
    }
    %c0_i32_1 = arith.constant 0 : i32
    %3 = arith.cmpi ne, %arg1, %c0_i32_1 : i32
    %4 = arith.extui %3 : i1 to i32
    %c0_i32_2 = arith.constant 0 : i32
    %5 = arith.cmpi ne, %4, %c0_i32_2 : i32
    scf.if %5 {
      %c16_59 = arith.constant 16 : index
      %c0_60 = arith.constant 0 : index
      %67 = vector.load %arg10[%c16_59, %c0_60] : memref<32x128xbf16, #tpu.memory_space<vmem>>, vector<16x128xbf16>
      %c0_61 = arith.constant 0 : index
      %c0_62 = arith.constant 0 : index
      %68 = vector.load %arg10[%c0_61, %c0_62] : memref<32x128xbf16, #tpu.memory_space<vmem>>, vector<16x128xbf16>
      tpu.vector_store %arg10[%c0_61, %c0_62], %67 {strides = array<i32>} : memref<32x128xbf16, #tpu.memory_space<vmem>>, vector<16x128xbf16>,
      %c16_63 = arith.constant 16 : index
      %c0_64 = arith.constant 0 : index
      %69 = vector.load %arg11[%c16_63, %c0_64] : memref<32x128xbf16, #tpu.memory_space<vmem>>, vector<16x128xbf16>
      %c0_65 = arith.constant 0 : index
      %c0_66 = arith.constant 0 : index
      %70 = vector.load %arg11[%c0_65, %c0_66] : memref<32x128xbf16, #tpu.memory_space<vmem>>, vector<16x128xbf16>
      tpu.vector_store %arg11[%c0_65, %c0_66], %69 {strides = array<i32>} : memref<32x128xbf16, #tpu.memory_space<vmem>>, vector<16x128xbf16>,
    } else {
    }
    %c0 = arith.constant 0 : index
    %c0_3 = arith.constant 0 : index
    %c0_4 = arith.constant 0 : index
    %6 = vector.load %arg2[%c0, %c0_3, %c0_4] : memref<1x16x128xbf16, #tpu.memory_space<vmem>>, vector<1x16x128xbf16>
    %7 = vector.shape_cast %6 : vector<1x16x128xbf16> to vector<16x128xbf16>
    %c16 = arith.constant 16 : index
    %c0_5 = arith.constant 0 : index
    %8 = vector.load %arg10[%c16, %c0_5] : memref<32x128xbf16, #tpu.memory_space<vmem>>, vector<16x128xbf16>
    tpu.vector_store %arg10[%c16, %c0_5], %7 {strides = array<i32>} : memref<32x128xbf16, #tpu.memory_space<vmem>>, vector<16x128xbf16>,
    %cst = arith.constant 0.000000e+00 : f32
    %9 = vector.broadcast %cst : f32 to vector<16x128xf32>
    %c14 = arith.constant 14 : index
    %c0_6 = arith.constant 0 : index
    %10 = vector.load %arg10[%c14, %c0_6] : memref<32x128xbf16, #tpu.memory_space<vmem>>, vector<16x128xbf16>
    %c0_7 = arith.constant 0 : index
    %c0_8 = arith.constant 0 : index
    %c0_9 = arith.constant 0 : index
    %11 = vector.load %arg3[%c0_7, %c0_8, %c0_9] : memref<3x128x128xbf16, #tpu.memory_space<vmem>>, vector<1x128x128xbf16>
    %12 = vector.shape_cast %11 : vector<1x128x128xbf16> to vector<128x128xbf16>
    %cst_10 = arith.constant dense<0.000000e+00> : vector<16x128xf32>
    %13 = tpu.matmul %10, %12, %cst_10 {dimension_numbers = #tpu.dot_dimension_numbers<[1], [0], [0], [1], [0, 0, 1, 1], [], []>} : vector<16x128xbf16>, vector<128x128xbf16>, vector<16x128xf32> -> vector<16x128xf32>
    %14 = arith.addf %9, %13 : vector<16x128xf32>
    %c15 = arith.constant 15 : index
    %c0_11 = arith.constant 0 : index
    %15 = vector.load %arg10[%c15, %c0_11] : memref<32x128xbf16, #tpu.memory_space<vmem>>, vector<16x128xbf16>
    %c1 = arith.constant 1 : index
    %c0_12 = arith.constant 0 : index
    %c0_13 = arith.constant 0 : index
    %16 = vector.load %arg3[%c1, %c0_12, %c0_13] : memref<3x128x128xbf16, #tpu.memory_space<vmem>>, vector<1x128x128xbf16>
    %17 = vector.shape_cast %16 : vector<1x128x128xbf16> to vector<128x128xbf16>
    %cst_14 = arith.constant dense<0.000000e+00> : vector<16x128xf32>
    %18 = tpu.matmul %15, %17, %cst_14 {dimension_numbers = #tpu.dot_dimension_numbers<[1], [0], [0], [1], [0, 0, 1, 1], [], []>} : vector<16x128xbf16>, vector<128x128xbf16>, vector<16x128xf32> -> vector<16x128xf32>
    %19 = arith.addf %14, %18 : vector<16x128xf32>
    %c16_15 = arith.constant 16 : index
    %c0_16 = arith.constant 0 : index
    %20 = vector.load %arg10[%c16_15, %c0_16] : memref<32x128xbf16, #tpu.memory_space<vmem>>, vector<16x128xbf16>
    %c2 = arith.constant 2 : index
    %c0_17 = arith.constant 0 : index
    %c0_18 = arith.constant 0 : index
    %21 = vector.load %arg3[%c2, %c0_17, %c0_18] : memref<3x128x128xbf16, #tpu.memory_space<vmem>>, vector<1x128x128xbf16>
    %22 = vector.shape_cast %21 : vector<1x128x128xbf16> to vector<128x128xbf16>
    %cst_19 = arith.constant dense<0.000000e+00> : vector<16x128xf32>
    %23 = tpu.matmul %20, %22, %cst_19 {dimension_numbers = #tpu.dot_dimension_numbers<[1], [0], [0], [1], [0, 0, 1, 1], [], []>} : vector<16x128xbf16>, vector<128x128xbf16>, vector<16x128xf32> -> vector<16x128xf32>
    %24 = arith.addf %19, %23 : vector<16x128xf32>
    %c0_20 = arith.constant 0 : index
    %c0_21 = arith.constant 0 : index
    %25 = vector.load %arg4[%c0_20, %c0_21] : memref<1x128xf32, #tpu.memory_space<vmem>>, vector<1x128xf32>
    %26 = vector.broadcast %25 : vector<1x128xf32> to vector<16x128xf32>
    %27 = arith.addf %24, %26 : vector<16x128xf32>
    %cst_22 = arith.constant 0.000000e+00 : f32
    %28 = vector.broadcast %cst_22 : f32 to vector<16x128xf32>
    %29 = arith.maximumf %27, %28 : vector<16x128xf32>
    %30 = arith.truncf %29 : vector<16x128xf32> to vector<16x128xbf16>
    %c16_23 = arith.constant 16 : index
    %c0_24 = arith.constant 0 : index
    %31 = vector.load %arg11[%c16_23, %c0_24] : memref<32x128xbf16, #tpu.memory_space<vmem>>, vector<16x128xbf16>
    tpu.vector_store %arg11[%c16_23, %c0_24], %30 {strides = array<i32>} : memref<32x128xbf16, #tpu.memory_space<vmem>>, vector<16x128xbf16>,
    %cst_25 = arith.constant 0.000000e+00 : f32
    %32 = vector.broadcast %cst_25 : f32 to vector<16x128xf32>
    %c14_26 = arith.constant 14 : index
    %c0_27 = arith.constant 0 : index
    %33 = vector.load %arg11[%c14_26, %c0_27] : memref<32x128xbf16, #tpu.memory_space<vmem>>, vector<16x128xbf16>
    %c0_28 = arith.constant 0 : index
    %c0_29 = arith.constant 0 : index
    %c0_30 = arith.constant 0 : index
    %34 = vector.load %arg5[%c0_28, %c0_29, %c0_30] : memref<3x128x128xbf16, #tpu.memory_space<vmem>>, vector<1x128x128xbf16>
    %35 = vector.shape_cast %34 : vector<1x128x128xbf16> to vector<128x128xbf16>
    %cst_31 = arith.constant dense<0.000000e+00> : vector<16x128xf32>
    %36 = tpu.matmul %33, %35, %cst_31 {dimension_numbers = #tpu.dot_dimension_numbers<[1], [0], [0], [1], [0, 0, 1, 1], [], []>} : vector<16x128xbf16>, vector<128x128xbf16>, vector<16x128xf32> -> vector<16x128xf32>
    %37 = arith.addf %32, %36 : vector<16x128xf32>
    %c15_32 = arith.constant 15 : index
    %c0_33 = arith.constant 0 : index
    %38 = vector.load %arg11[%c15_32, %c0_33] : memref<32x128xbf16, #tpu.memory_space<vmem>>, vector<16x128xbf16>
    %c1_34 = arith.constant 1 : index
    %c0_35 = arith.constant 0 : index
    %c0_36 = arith.constant 0 : index
    %39 = vector.load %arg5[%c1_34, %c0_35, %c0_36] : memref<3x128x128xbf16, #tpu.memory_space<vmem>>, vector<1x128x128xbf16>
    %40 = vector.shape_cast %39 : vector<1x128x128xbf16> to vector<128x128xbf16>
    %cst_37 = arith.constant dense<0.000000e+00> : vector<16x128xf32>
    %41 = tpu.matmul %38, %40, %cst_37 {dimension_numbers = #tpu.dot_dimension_numbers<[1], [0], [0], [1], [0, 0, 1, 1], [], []>} : vector<16x128xbf16>, vector<128x128xbf16>, vector<16x128xf32> -> vector<16x128xf32>
    %42 = arith.addf %37, %41 : vector<16x128xf32>
    %c16_38 = arith.constant 16 : index
    %c0_39 = arith.constant 0 : index
    %43 = vector.load %arg11[%c16_38, %c0_39] : memref<32x128xbf16, #tpu.memory_space<vmem>>, vector<16x128xbf16>
    %c2_40 = arith.constant 2 : index
    %c0_41 = arith.constant 0 : index
    %c0_42 = arith.constant 0 : index
    %44 = vector.load %arg5[%c2_40, %c0_41, %c0_42] : memref<3x128x128xbf16, #tpu.memory_space<vmem>>, vector<1x128x128xbf16>
    %45 = vector.shape_cast %44 : vector<1x128x128xbf16> to vector<128x128xbf16>
    %cst_43 = arith.constant dense<0.000000e+00> : vector<16x128xf32>
    %46 = tpu.matmul %43, %45, %cst_43 {dimension_numbers = #tpu.dot_dimension_numbers<[1], [0], [0], [1], [0, 0, 1, 1], [], []>} : vector<16x128xbf16>, vector<128x128xbf16>, vector<16x128xf32> -> vector<16x128xf32>
    %47 = arith.addf %42, %46 : vector<16x128xf32>
    %c0_44 = arith.constant 0 : index
    %c0_45 = arith.constant 0 : index
    %48 = vector.load %arg6[%c0_44, %c0_45] : memref<1x128xf32, #tpu.memory_space<vmem>>, vector<1x128xf32>
    %49 = vector.broadcast %48 : vector<1x128xf32> to vector<16x128xf32>
    %50 = arith.addf %47, %49 : vector<16x128xf32>
    %cst_46 = arith.constant 0.000000e+00 : f32
    %51 = vector.broadcast %cst_46 : f32 to vector<16x128xf32>
    %52 = arith.maximumf %50, %51 : vector<16x128xf32>
    %c0_47 = arith.constant 0 : index
    %c0_48 = arith.constant 0 : index
    %c0_49 = arith.constant 0 : index
    %53 = vector.load %arg2[%c0_47, %c0_48, %c0_49] : memref<1x16x128xbf16, #tpu.memory_space<vmem>>, vector<1x16x128xbf16>
    %54 = vector.shape_cast %53 : vector<1x16x128xbf16> to vector<16x128xbf16>
    %c0_50 = arith.constant 0 : index
    %c0_51 = arith.constant 0 : index
    %55 = vector.load %arg7[%c0_50, %c0_51] : memref<128x128xbf16, #tpu.memory_space<vmem>>, vector<128x128xbf16>
    %cst_52 = arith.constant dense<0.000000e+00> : vector<16x128xf32>
    %56 = tpu.matmul %54, %55, %cst_52 {dimension_numbers = #tpu.dot_dimension_numbers<[1], [0], [0], [1], [0, 0, 1, 1], [], []>} : vector<16x128xbf16>, vector<128x128xbf16>, vector<16x128xf32> -> vector<16x128xf32>
    %c0_53 = arith.constant 0 : index
    %c0_54 = arith.constant 0 : index
    %57 = vector.load %arg8[%c0_53, %c0_54] : memref<1x128xf32, #tpu.memory_space<vmem>>, vector<1x128xf32>
    %58 = vector.broadcast %57 : vector<1x128xf32> to vector<16x128xf32>
    %59 = arith.addf %56, %58 : vector<16x128xf32>
    %60 = arith.addf %52, %59 : vector<16x128xf32>
    %cst_55 = arith.constant 0.000000e+00 : f32
    %61 = vector.broadcast %cst_55 : f32 to vector<16x128xf32>
    %62 = arith.maximumf %60, %61 : vector<16x128xf32>
    %63 = arith.truncf %62 : vector<16x128xf32> to vector<16x128xbf16>
    %c0_56 = arith.constant 0 : index
    %c0_57 = arith.constant 0 : index
    %c0_58 = arith.constant 0 : index
    %64 = vector.load %arg9[%c0_56, %c0_57, %c0_58] : memref<1x16x128xbf16, #tpu.memory_space<vmem>>, vector<1x16x128xbf16>
    %65 = vector.shape_cast %64 : vector<1x16x128xbf16> to vector<16x128xbf16>
    %66 = vector.shape_cast %63 : vector<16x128xbf16> to vector<1x16x128xbf16>
    tpu.vector_store %arg9[%c0_56, %c0_57, %c0_58], %66 {strides = array<i32>} : memref<1x16x128xbf16, #tpu.memory_space<vmem>>, vector<1x16x128xbf16>,
    return
  }
  func.func @transform_0(%arg0: i32, %arg1: i32) -> (i32, i32, i32) {
    %c0_i32 = arith.constant 0 : i32
    %c0_i32_0 = arith.constant 0 : i32
    return %arg0, %arg1, %c0_i32 : i32, i32, i32
  }
  func.func @transform_1(%arg0: i32, %arg1: i32) -> (i32, i32, i32) {
    %c0_i32 = arith.constant 0 : i32
    %c0_i32_0 = arith.constant 0 : i32
    %c0_i32_1 = arith.constant 0 : i32
    %c0_i32_2 = arith.constant 0 : i32
    return %c0_i32, %c0_i32_0, %c0_i32_1 : i32, i32, i32
  }
  func.func @transform_2(%arg0: i32, %arg1: i32) -> (i32, i32) {
    %c0_i32 = arith.constant 0 : i32
    %c0_i32_0 = arith.constant 0 : i32
    %c0_i32_1 = arith.constant 0 : i32
    return %c0_i32, %c0_i32_0 : i32, i32
  }
  func.func @transform_3(%arg0: i32, %arg1: i32) -> (i32, i32, i32) {
    %c0_i32 = arith.constant 0 : i32
    %c0_i32_0 = arith.constant 0 : i32
    %c0_i32_1 = arith.constant 0 : i32
    %c0_i32_2 = arith.constant 0 : i32
    return %c0_i32, %c0_i32_0, %c0_i32_1 : i32, i32, i32
  }
  func.func @transform_4(%arg0: i32, %arg1: i32) -> (i32, i32) {
    %c0_i32 = arith.constant 0 : i32
    %c0_i32_0 = arith.constant 0 : i32
    %c0_i32_1 = arith.constant 0 : i32
    return %c0_i32, %c0_i32_0 : i32, i32
  }
  func.func @transform_5(%arg0: i32, %arg1: i32) -> (i32, i32) {
    %c0_i32 = arith.constant 0 : i32
    %c0_i32_0 = arith.constant 0 : i32
    %c0_i32_1 = arith.constant 0 : i32
    return %c0_i32, %c0_i32_0 : i32, i32
  }
  func.func @transform_6(%arg0: i32, %arg1: i32) -> (i32, i32) {
    %c0_i32 = arith.constant 0 : i32
    %c0_i32_0 = arith.constant 0 : i32
    %c0_i32_1 = arith.constant 0 : i32
    return %c0_i32, %c0_i32_0 : i32, i32
  }
  func.func @transform_7(%arg0: i32, %arg1: i32) -> (i32, i32, i32) {
    %c0_i32 = arith.constant 0 : i32
    %c0_i32_0 = arith.constant 0 : i32
    return %arg0, %arg1, %c0_i32 : i32, i32, i32
  }
}

</mosaic_0001>

<llo_original>
// kernel: tpu_custom_call.1
$region0: #{tpu_custom_call.1}
  #allocation0 [shape = 'u32[]', space=smem, size = 0x4, offset = 0x4, fixed_abs, tag = 'smem constant byte address 0x4 - core index']
  #allocation1 [shape = 'u32[144,128]{1,0:T(1,128)}', space=vmem, size = 0x12000, scoped, tag = 'internal scratch']
  %s0 = inlined_call_operand.hbm [shape: f32[8,128], index: 0, kind: input, shape index: {}]
  %s1 = inlined_call_operand.hbm [shape: f32[8,128], index: 1, kind: output, shape index: {}]
  %s2 = sld [smem:[#allocation0]]
  $region18: #{tpu_custom_call.1} parent=0
    _
  %s4 = ssub.s32 1, %s2
  %s5 = scalar_select 0, %s4, %s2
  $region1: #{tpu_custom_call.1} parent=0
    #allocation2 [shape = 'u8[4096]{0}', space=vmem, size = 0x1000, scoped, tag = 'input window, operand 0, single buffered']
    #allocation3 [shape = 's32[1]{0}', space=sflag, size = 0x4, scoped, tag = 'scoped memory for tpu_custom_call.1']
    #allocation4 [shape = 's32[1]{0}', space=sflag, size = 0x4, scoped, tag = 'scoped memory for tpu_custom_call.1']
    #allocation5 [shape = 'u8[4096]{0}', space=vmem, size = 0x1000, scoped, tag = 'output window, operand 0, single buffered']
    %6 = vsyncpa [#allocation3], 0
    %7 = vsyncpa [#allocation4], 0
    // Predicated region
    $region2: #{tpu_custom_call.1} parent=1 // pred_check
      _
    $region3: #{tpu_custom_call.1} parent=1 // pred_check_branch
      %9 = sbr.rel (0) target = $region5
    $region4: #{tpu_custom_call.1} parent=1 // pred_region
      %s11 = ssub.s32 128, 128
      %12 = vsyncadd [#allocation3], %s11
      %s14 = sshll.u32 [#allocation2], 4
      %s15 = int_to_ptr.vmem [resolvable:$true] %s14
      %17 = dma.hbm_to_vmem [thread:$0]  %s0, 128, %s15, [#allocation3]
    $region5: #{tpu_custom_call.1} parent=1 // pred_fallthru
      _
    // Predicated region
    $region6: #{tpu_custom_call.1} parent=1 // pred_check
      _
    $region7: #{tpu_custom_call.1} parent=1 // pred_check_branch
      %19 = sbr.rel (0) target = $region9
    $region8: #{tpu_custom_call.1} parent=1 // pred_region
      %20 = dma.done [#allocation3], 128
    $region9: #{tpu_custom_call.1} parent=1 // pred_fallthru
      _
    %v21 = vld [vmem:[#allocation2] sm:$0xff]
    %22 = vst [vmem:[#allocation5] sm:$0xff] %v21
    // Predicated region
    $region10: #{tpu_custom_call.1} parent=1 // pred_check
      _
    $region11: #{tpu_custom_call.1} parent=1 // pred_check_branch
      %24 = sbr.rel (0) target = $region13
    $region12: #{tpu_custom_call.1} parent=1 // pred_region
      %s26 = ssub.s32 128, 128
      %27 = vsyncadd [#allocation4], %s26
      %s29 = sshll.u32 [#allocation5], 4
      %s30 = int_to_ptr.vmem [resolvable:$true] %s29
      %32 = dma.vmem_to_hbm [thread:$0]  %s30, 128, %s1, [#allocation4]
    $region13: #{tpu_custom_call.1} parent=1 // pred_fallthru
      _
    // Predicated region
    $region14: #{tpu_custom_call.1} parent=1 // pred_check
      _
    $region15: #{tpu_custom_call.1} parent=1 // pred_check_branch
      %34 = sbr.rel (0) target = $region17
    $region16: #{tpu_custom_call.1} parent=1 // pred_region
      %35 = dma.done [#allocation4], 128
    $region17: #{tpu_custom_call.1} parent=1 // pred_fallthru
      _
    %36 = vsyncpa [#allocation3], 1
    %37 = vsyncpa [#allocation4], 1

// kernel: tpu_custom_call.1
$region0: #{tpu_custom_call.1}
  #allocation0 [shape = 'u32[]', space=smem, size = 0x4, offset = 0x4, fixed_abs, tag = 'smem constant byte address 0x4 - core index']
  #allocation1 [shape = 'u32[144,128]{1,0:T(1,128)}', space=vmem, size = 0x12000, scoped, tag = 'internal scratch']
  #allocation2 [shape = 'bf16[32,128]{1,0:T(8,128)(2,1)}', space=vmem, size = 0x2000, scoped, tag = 'scratch operand']
  #allocation3 [shape = 'bf16[32,128]{1,0:T(8,128)(2,1)}', space=vmem, size = 0x2000, scoped, tag = 'scratch operand']
  %s0 = inlined_call_operand.hbm [shape: bf16[2,48,128], index: 0, kind: input, shape index: {}]
  %s1 = inlined_call_operand.hbm [shape: bf16[3,128,128], index: 1, kind: input, shape index: {}]
  %s2 = inlined_call_operand.vmem [shape: f32[1,128], index: 2, kind: input, shape index: {}]
  %s3 = inlined_call_operand.hbm [shape: bf16[3,128,128], index: 3, kind: input, shape index: {}]
  %s4 = inlined_call_operand.vmem [shape: f32[1,128], index: 4, kind: input, shape index: {}]
  %s5 = inlined_call_operand.hbm [shape: bf16[128,128], index: 5, kind: input, shape index: {}]
  %s6 = inlined_call_operand.vmem [shape: f32[1,128], index: 6, kind: input, shape index: {}]
  %s7 = inlined_call_operand.hbm [shape: bf16[2,48,128], index: 7, kind: output, shape index: {}]
  %s8 = sld [smem:[#allocation0]]
  $region85: #{tpu_custom_call.1} parent=0
    _
  %s10 = ssub.s32 1, %s8
  %s11 = scalar_select 0, %s10, %s8
  $region1: #{tpu_custom_call.1} parent=0
    #allocation4 [shape = 'u8[8192]{0}', space=vmem, size = 0x2000, scoped, tag = 'input window, operand 0']
    #allocation5 [shape = 's32[2]{0}', space=sflag, size = 0x8, scoped, tag = 'scoped memory for tpu_custom_call.1']
    #allocation6 [shape = 's32[2]{0}', space=sflag, size = 0x8, scoped, tag = 'scoped memory for tpu_custom_call.1']
    #allocation7 [shape = 'u8[98304]{0}', space=vmem, size = 0x18000, scoped, tag = 'input window, operand 1, single buffered']
    #allocation8 [shape = 's32[1]{0}', space=sflag, size = 0x4, scoped, tag = 'scoped memory for tpu_custom_call.1']
    #allocation9 [shape = 'u8[98304]{0}', space=vmem, size = 0x18000, scoped, tag = 'input window, operand 3, single buffered']
    #allocation10 [shape = 'u8[32768]{0}', space=vmem, size = 0x8000, scoped, tag = 'input window, operand 5, single buffered']
    #allocation11 [shape = 's32[1]{0}', space=sflag, size = 0x4, scoped, tag = 'scoped memory for tpu_custom_call.1']
    #allocation12 [shape = 'u8[8192]{0}', space=vmem, size = 0x2000, scoped, tag = 'output window, operand 0']
    %12 = vsyncpa [#allocation5], 0
    %s13 = scalar_lea.sflag [#allocation5], 1
    %14 = vsyncpa %s13, 0
    %15 = vsyncpa [#allocation8], 0
    %16 = vsyncpa [#allocation11], 0
    %17 = vsyncpa [#allocation6], 0
    %s18 = scalar_lea.sflag [#allocation6], 1
    %19 = vsyncpa %s18, 0
    loop: start=0, step=1, limit=8
    $region2: #{tpu_custom_call.1} parent=1 // loop_pre_header
      _
    $region3: #{tpu_custom_call.1} parent=1 // loop_header
      %s21 = sphi 0, %s25
      %p22 = scmp.ge.s32.totalorder %s21, 8
      %s28 = sphi 0, %s40
      %s29 = sphi 0, %s36
      %s30 = sphi 0, %s28
      %s31 = sphi 0, %s29
      %s32 = sphi 0, %s30
      %s33 = sphi 0, %s31
      %s45 = sphi 0, %s47
      %s48 = sphi 0, %s45
      %s49 = sphi 0, %s48
      %s65 = sphi 0, %s49
      %s69 = sphi 0, %s69
      %s71 = sphi 0, %s69
      %s72 = sphi 0, %s71
      %s86 = sphi 0, %s72
      %s90 = sphi 0, %s90
      %s92 = sphi 0, %s90
      %s93 = sphi 0, %s92
      %s107 = sphi 0, %s93
      %s111 = sphi 0, %s111
      %s113 = sphi 0, %s111
      %s114 = sphi 0, %s113
      %s128 = sphi 0, %s114
      %s132 = sphi 0, %s132
      %s134 = sphi 0, %s132
      %s135 = sphi 0, %s134
      %s149 = sphi 0, %s135
      %s153 = sphi 0, %s153
      %s155 = sphi 0, %s153
      %s156 = sphi 0, %s155
      %s170 = sphi 0, %s156
      %s174 = sphi 0, %s174
      %s176 = sphi 0, %s174
      %s177 = sphi 0, %s176
      %s191 = sphi 0, %s177
      %s199 = sphi 0, %s201
      %s202 = sphi 0, %s199
      %s203 = sphi 0, %s202
      %s219 = sphi 0, %s203
    $region4: #{tpu_custom_call.1} parent=1 // loop_header_branch
      %24 = sbr.rel (%p22) target = $region8
    $region5: #{tpu_custom_call.1} parent=1 // loop_body
      %s26 = ssub.s32 %s21, 1
      %s27 = ssub.s32 %s21, 2
      %s34 = sadd.s32 1, %s29
      %p35 = scmp.ge.s32.totalorder %s34, 3
      %s36 = scalar_select %p35, 0, %s34
      %s37 = sadd.s32 1, %s28
      %s38 = scalar_select %p35, %s37, %s28
      %p39 = scmp.ge.s32.totalorder %s38, 2
      %s40 = scalar_select %p39, 0, %s38
      %s41 = ssub.s32 %s28, %s40
      %s42 = ssub.s32 %s29, %s36
      %s43 = sor.u32 %s41, %s42
      %p44 = scmp.eq.s32.totalorder %s43, 0
      %s46 = sadd.s32 %s45, 1
      %s47 = scalar_select %p44, %s45, %s46
      %p50 = pneg %p44
      %p51 = scmp.eq.s32.totalorder %s21, 5
      %p52 = por %p50, %p51
      %p53 = scmp.ne.s32.totalorder %s45, %s48
      %p54 = scmp.eq.s32.totalorder %s21, 0
      %p55 = por %p53, %p54
      %p56 = scmp.ne.s32.totalorder %s45, %s48
      %p57 = scmp.eq.s32.totalorder %s26, 5
      %p58 = por %p56, %p57
      %p59 = scmp.ne.s32.totalorder %s48, %s49
      %p60 = scmp.eq.s32.totalorder %s26, 0
      %p61 = por %p59, %p60
      %p62 = scmp.ne.s32.totalorder %s48, %s49
      %p63 = scmp.eq.s32.totalorder %s27, 5
      %p64 = por %p62, %p63
      %p66 = scmp.ne.s32.totalorder %s49, %s65
      %p67 = scmp.eq.s32.totalorder %s27, 0
      %p68 = por %p66, %p67
      %s70 = sadd.s32 %s69, 1
      %p73 = scmp.eq.s32.totalorder %s21, 5
      %p74 = scmp.ne.s32.totalorder %s69, %s71
      %p75 = scmp.eq.s32.totalorder %s21, 0
      %p76 = por %p74, %p75
      %p77 = scmp.ne.s32.totalorder %s69, %s71
      %p78 = scmp.eq.s32.totalorder %s26, 5
      %p79 = por %p77, %p78
      %p80 = scmp.ne.s32.totalorder %s71, %s72
      %p81 = scmp.eq.s32.totalorder %s26, 0
      %p82 = por %p80, %p81
      %p83 = scmp.ne.s32.totalorder %s71, %s72
      %p84 = scmp.eq.s32.totalorder %s27, 5
      %p85 = por %p83, %p84
      %p87 = scmp.ne.s32.totalorder %s72, %s86
      %p88 = scmp.eq.s32.totalorder %s27, 0
      %p89 = por %p87, %p88
      %s91 = sadd.s32 %s90, 1
      %p94 = scmp.eq.s32.totalorder %s21, 5
      %p95 = scmp.ne.s32.totalorder %s90, %s92
      %p96 = scmp.eq.s32.totalorder %s21, 0
      %p97 = por %p95, %p96
      %p98 = scmp.ne.s32.totalorder %s90, %s92
      %p99 = scmp.eq.s32.totalorder %s26, 5
      %p100 = por %p98, %p99
      %p101 = scmp.ne.s32.totalorder %s92, %s93
      %p102 = scmp.eq.s32.totalorder %s26, 0
      %p103 = por %p101, %p102
      %p104 = scmp.ne.s32.totalorder %s92, %s93
      %p105 = scmp.eq.s32.totalorder %s27, 5
      %p106 = por %p104, %p105
      %p108 = scmp.ne.s32.totalorder %s93, %s107
      %p109 = scmp.eq.s32.totalorder %s27, 0
      %p110 = por %p108, %p109
      %s112 = sadd.s32 %s111, 1
      %p115 = scmp.eq.s32.totalorder %s21, 5
      %p116 = scmp.ne.s32.totalorder %s111, %s113
      %p117 = scmp.eq.s32.totalorder %s21, 0
      %p118 = por %p116, %p117
      %p119 = scmp.ne.s32.totalorder %s111, %s113
      %p120 = scmp.eq.s32.totalorder %s26, 5
      %p121 = por %p119, %p120
      %p122 = scmp.ne.s32.totalorder %s113, %s114
      %p123 = scmp.eq.s32.totalorder %s26, 0
      %p124 = por %p122, %p123
      %p125 = scmp.ne.s32.totalorder %s113, %s114
      %p126 = scmp.eq.s32.totalorder %s27, 5
      %p127 = por %p125, %p126
      %p129 = scmp.ne.s32.totalorder %s114, %s128
      %p130 = scmp.eq.s32.totalorder %s27, 0
      %p131 = por %p129, %p130
      %s133 = sadd.s32 %s132, 1
      %p136 = scmp.eq.s32.totalorder %s21, 5
      %p137 = scmp.ne.s32.totalorder %s132, %s134
      %p138 = scmp.eq.s32.totalorder %s21, 0
      %p139 = por %p137, %p138
      %p140 = scmp.ne.s32.totalorder %s132, %s134
      %p141 = scmp.eq.s32.totalorder %s26, 5
      %p142 = por %p140, %p141
      %p143 = scmp.ne.s32.totalorder %s134, %s135
      %p144 = scmp.eq.s32.totalorder %s26, 0
      %p145 = por %p143, %p144
      %p146 = scmp.ne.s32.totalorder %s134, %s135
      %p147 = scmp.eq.s32.totalorder %s27, 5
      %p148 = por %p146, %p147
      %p150 = scmp.ne.s32.totalorder %s135, %s149
      %p151 = scmp.eq.s32.totalorder %s27, 0
      %p152 = por %p150, %p151
      %s154 = sadd.s32 %s153, 1
      %p157 = scmp.eq.s32.totalorder %s21, 5
      %p158 = scmp.ne.s32.totalorder %s153, %s155
      %p159 = scmp.eq.s32.totalorder %s21, 0
      %p160 = por %p158, %p159
      %p161 = scmp.ne.s32.totalorder %s153, %s155
      %p162 = scmp.eq.s32.totalorder %s26, 5
      %p163 = por %p161, %p162
      %p164 = scmp.ne.s32.totalorder %s155, %s156
      %p165 = scmp.eq.s32.totalorder %s26, 0
      %p166 = por %p164, %p165
      %p167 = scmp.ne.s32.totalorder %s155, %s156
      %p168 = scmp.eq.s32.totalorder %s27, 5
      %p169 = por %p167, %p168
      %p171 = scmp.ne.s32.totalorder %s156, %s170
      %p172 = scmp.eq.s32.totalorder %s27, 0
      %p173 = por %p171, %p172
      %s175 = sadd.s32 %s174, 1
      %p178 = scmp.eq.s32.totalorder %s21, 5
      %p179 = scmp.ne.s32.totalorder %s174, %s176
      %p180 = scmp.eq.s32.totalorder %s21, 0
      %p181 = por %p179, %p180
      %p182 = scmp.ne.s32.totalorder %s174, %s176
      %p183 = scmp.eq.s32.totalorder %s26, 5
      %p184 = por %p182, %p183
      %p185 = scmp.ne.s32.totalorder %s176, %s177
      %p186 = scmp.eq.s32.totalorder %s26, 0
      %p187 = por %p185, %p186
      %p188 = scmp.ne.s32.totalorder %s176, %s177
      %p189 = scmp.eq.s32.totalorder %s27, 5
      %p190 = por %p188, %p189
      %p192 = scmp.ne.s32.totalorder %s177, %s191
      %p193 = scmp.eq.s32.totalorder %s27, 0
      %p194 = por %p192, %p193
      %s195 = ssub.s32 %s28, %s40
      %s196 = ssub.s32 %s29, %s36
      %s197 = sor.u32 %s195, %s196
      %p198 = scmp.eq.s32.totalorder %s197, 0
      %s200 = sadd.s32 %s199, 1
      %s201 = scalar_select %p198, %s199, %s200
      %p204 = pneg %p198
      %p205 = scmp.eq.s32.totalorder %s21, 5
      %p206 = por %p204, %p205
      %p207 = scmp.ne.s32.totalorder %s199, %s202
      %p208 = scmp.eq.s32.totalorder %s21, 0
      %p209 = por %p207, %p208
      %p210 = scmp.ne.s32.totalorder %s199, %s202
      %p211 = scmp.eq.s32.totalorder %s26, 5
      %p212 = por %p210, %p211
      %p213 = scmp.ne.s32.totalorder %s202, %s203
      %p214 = scmp.eq.s32.totalorder %s26, 0
      %p215 = por %p213, %p214
      %p216 = scmp.ne.s32.totalorder %s202, %s203
      %p217 = scmp.eq.s32.totalorder %s27, 5
      %p218 = por %p216, %p217
      %p220 = scmp.ne.s32.totalorder %s203, %s219
      %p221 = scmp.eq.s32.totalorder %s27, 0
      %p222 = por %p220, %p221
      %p223 = scmp.le.s32.totalorder 1, %s21
      %p224 = scmp.lt.s32.totalorder %s21, 7
      %p225 = pnand %p223, %p224
      %p226 = pneg %p225
      // Predicated region
      $region9: #{tpu_custom_call.1} parent=5 // pred_check
        _
      $region10: #{tpu_custom_call.1} parent=5 // pred_check_branch
        %228 = sbr.rel (%p225) target = $region12
      $region11: #{tpu_custom_call.1} parent=5 // pred_region
        %s229 = ssub.s32 %s21, 1
        // Predicated region
        $region13: #{tpu_custom_call.1} parent=11 // pred_check
          %p230 = pneg %p82
        $region14: #{tpu_custom_call.1} parent=11 // pred_check_branch
          %232 = sbr.rel (%p230) target = $region16
        $region15: #{tpu_custom_call.1} parent=11 // pred_region
          %s234 = ssub.s32 3072, 3072
          %235 = vsyncadd [#allocation8], %s234
          %s236 = sshll.u32 [#allocation7], 4
          %s237 = int_to_ptr.vmem [resolvable:$true] %s236
          %242 = dma.hbm_to_vmem [thread:$0]  %s1, 3072, %s237, [#allocation8], 64, 64, 4
        $region16: #{tpu_custom_call.1} parent=11 // pred_fallthru
          _
        // Predicated region
        $region17: #{tpu_custom_call.1} parent=11 // pred_check
          %p243 = pneg %p103
        $region18: #{tpu_custom_call.1} parent=11 // pred_check_branch
          %245 = sbr.rel (%p243) target = $region20
        $region19: #{tpu_custom_call.1} parent=11 // pred_region
          _
        $region20: #{tpu_custom_call.1} parent=11 // pred_fallthru
          _
        // Predicated region
        $region21: #{tpu_custom_call.1} parent=11 // pred_check
          %p246 = pneg %p124
        $region22: #{tpu_custom_call.1} parent=11 // pred_check_branch
          %248 = sbr.rel (%p246) target = $region24
        $region23: #{tpu_custom_call.1} parent=11 // pred_region
          %s250 = ssub.s32 3072, 3072
          %251 = vsyncadd [#allocation8], %s250
          %s252 = sshll.u32 [#allocation9], 4
          %s253 = int_to_ptr.vmem [resolvable:$true] %s252
          %258 = dma.hbm_to_vmem [thread:$0]  %s3, 3072, %s253, [#allocation8], 64, 64, 4
        $region24: #{tpu_custom_call.1} parent=11 // pred_fallthru
          _
        // Predicated region
        $region25: #{tpu_custom_call.1} parent=11 // pred_check
          %p259 = pneg %p145
        $region26: #{tpu_custom_call.1} parent=11 // pred_check_branch
          %261 = sbr.rel (%p259) target = $region28
        $region27: #{tpu_custom_call.1} parent=11 // pred_region
          _
        $region28: #{tpu_custom_call.1} parent=11 // pred_fallthru
          _
        // Predicated region
        $region29: #{tpu_custom_call.1} parent=11 // pred_check
          %p262 = pneg %p166
        $region30: #{tpu_custom_call.1} parent=11 // pred_check_branch
          %264 = sbr.rel (%p262) target = $region32
        $region31: #{tpu_custom_call.1} parent=11 // pred_region
          %s266 = ssub.s32 1024, 1024
          %267 = vsyncadd [#allocation11], %s266
          %s268 = sshll.u32 [#allocation10], 4
          %s269 = int_to_ptr.vmem [resolvable:$true] %s268
          %274 = dma.hbm_to_vmem [thread:$0]  %s5, 1024, %s269, [#allocation11], 64, 64, 4
        $region32: #{tpu_custom_call.1} parent=11 // pred_fallthru
          _
        // Predicated region
        $region33: #{tpu_custom_call.1} parent=11 // pred_check
          %p275 = pneg %p187
        $region34: #{tpu_custom_call.1} parent=11 // pred_check_branch
          %277 = sbr.rel (%p275) target = $region36
        $region35: #{tpu_custom_call.1} parent=11 // pred_region
          _
        $region36: #{tpu_custom_call.1} parent=11 // pred_fallthru
          _
      $region12: #{tpu_custom_call.1} parent=5 // pred_fallthru
        _
      %p278 = scmp.lt.s32.totalorder %s21, 6
      // Predicated region
      $region37: #{tpu_custom_call.1} parent=5 // pred_check
        %p279 = pneg %p278
      $region38: #{tpu_custom_call.1} parent=5 // pred_check_branch
        %281 = sbr.rel (%p279) target = $region40
      $region39: #{tpu_custom_call.1} parent=5 // pred_region
        // Predicated region
        $region41: #{tpu_custom_call.1} parent=39 // pred_check
          %p282 = pneg %p55
        $region42: #{tpu_custom_call.1} parent=39 // pred_check_branch
          %284 = sbr.rel (%p282) target = $region44
        $region43: #{tpu_custom_call.1} parent=39 // pred_region
          %s285 = sand.u32 %s45, 1
          %s286 = scalar_lea.sflag [#allocation5], %s285
          %s287 = sand.u32 %s45, 1
          %s288 = smul.addr %s287, 8
          %s289 = scalar_lea.vmem [#allocation4], %s288
          %s290 = smul.u32 2, %s29
          %s292 = ssub.s32 128, 128
          %293 = vsyncadd %s286, %s292
          %s294 = smul.addr %s28, 6
          %s295 = sadd.s32 %s290, %s294
          %s296 = smul.addr %s295, 64
          %s297 = scalar_lea.hbm %s0, %s296
          %s298 = sshll.u32 %s289, 4
          %s299 = int_to_ptr.vmem [resolvable:$true] %s298
          %304 = dma.hbm_to_vmem [thread:$0]  %s297, 128, %s299, %s286, 64, 64, 4
        $region44: #{tpu_custom_call.1} parent=39 // pred_fallthru
          _
      $region40: #{tpu_custom_call.1} parent=5 // pred_fallthru
        _
      %p305 = scmp.le.s32.totalorder 1, %s21
      %p306 = scmp.lt.s32.totalorder %s21, 7
      %p307 = pnand %p305, %p306
      %p308 = pneg %p307
      // Predicated region
      $region45: #{tpu_custom_call.1} parent=5 // pred_check
        _
      $region46: #{tpu_custom_call.1} parent=5 // pred_check_branch
        %310 = sbr.rel (%p307) target = $region48
      $region47: #{tpu_custom_call.1} parent=5 // pred_region
        %s311 = ssub.s32 %s21, 1
        %s312 = sand.u32 %s48, 1
        %s313 = scalar_lea.sflag [#allocation5], %s312
        %s314 = sand.u32 %s48, 1
        %s315 = smul.addr %s314, 8
        %s316 = scalar_lea.vmem [#allocation4], %s315
        // Predicated region
        $region49: #{tpu_custom_call.1} parent=47 // pred_check
          %p317 = pneg %p61
        $region50: #{tpu_custom_call.1} parent=47 // pred_check_branch
          %319 = sbr.rel (%p317) target = $region52
        $region51: #{tpu_custom_call.1} parent=47 // pred_region
          %320 = dma.done %s313, 128
        $region52: #{tpu_custom_call.1} parent=47 // pred_fallthru
          _
        // Predicated region
        $region53: #{tpu_custom_call.1} parent=47 // pred_check
          %p321 = pneg %p82
        $region54: #{tpu_custom_call.1} parent=47 // pred_check_branch
          %323 = sbr.rel (%p321) target = $region56
        $region55: #{tpu_custom_call.1} parent=47 // pred_region
          %324 = dma.done [#allocation8], 3072
        $region56: #{tpu_custom_call.1} parent=47 // pred_fallthru
          _
        // Predicated region
        $region57: #{tpu_custom_call.1} parent=47 // pred_check
          %p325 = pneg %p124
        $region58: #{tpu_custom_call.1} parent=47 // pred_check_branch
          %327 = sbr.rel (%p325) target = $region60
        $region59: #{tpu_custom_call.1} parent=47 // pred_region
          %328 = dma.done [#allocation8], 3072
        $region60: #{tpu_custom_call.1} parent=47 // pred_fallthru
          _
        // Predicated region
        $region61: #{tpu_custom_call.1} parent=47 // pred_check
          %p329 = pneg %p166
        $region62: #{tpu_custom_call.1} parent=47 // pred_check_branch
          %331 = sbr.rel (%p329) target = $region64
        $region63: #{tpu_custom_call.1} parent=47 // pred_region
          %332 = dma.done [#allocation11], 1024
        $region64: #{tpu_custom_call.1} parent=47 // pred_fallthru
          _
        %s333 = sand.u32 %s48, 1
        %s334 = scalar_lea.sflag [#allocation5], %s333
        %s335 = sand.u32 %s48, 1
        %s336 = smul.addr %s335, 8
        %s337 = scalar_lea.vmem [#allocation4], %s336
        %p338 = pneg %p61
        %p339 = pneg %p58
        %p340 = pneg %p82
        %p341 = pneg %p79
        %p342 = pneg %p103
        %p343 = pneg %p100
        %p344 = pneg %p124
        %p345 = pneg %p121
        %p346 = pneg %p145
        %p347 = pneg %p142
        %p348 = pneg %p166
        %p349 = pneg %p163
        %p350 = pneg %p187
        %p351 = pneg %p184
        %p352 = pneg %p215
        %p353 = pneg %p212
        %s354 = sand.u32 %s202, 1
        %s355 = scalar_lea.sflag [#allocation6], %s354
        %s356 = sand.u32 %s202, 1
        %s357 = smul.addr %s356, 8
        %s358 = scalar_lea.vmem [#allocation12], %s357
        %s359 = smul.u32 2, %s31
        %s360 = smul.u32 2, %s31
        %p362 = scmp.eq.s32.totalorder %s31, 0
        // Predicated region
        $region65: #{tpu_custom_call.1} parent=47 // pred_check
          %p363 = pneg %p362
        $region66: #{tpu_custom_call.1} parent=47 // pred_check_branch
          %365 = sbr.rel (%p363) target = $region68
        $region67: #{tpu_custom_call.1} parent=47 // pred_region
          %366 = vst [vmem:[#allocation2] sm:$0xf] 0
          %367 = vst [vmem:[#allocation2 + $0x4] sm:$0xf] 0
          %368 = vst [vmem:[#allocation3] sm:$0xf] 0
          %369 = vst [vmem:[#allocation3 + $0x4] sm:$0xf] 0
        $region68: #{tpu_custom_call.1} parent=47 // pred_fallthru
          _
        %p370 = scmp.ne.s32.totalorder %s31, 0
        // Predicated region
        $region69: #{tpu_custom_call.1} parent=47 // pred_check
          %p371 = pneg %p370
        $region70: #{tpu_custom_call.1} parent=47 // pred_check_branch
          %373 = sbr.rel (%p371) target = $region72
        $region71: #{tpu_custom_call.1} parent=47 // pred_region
          %v374 = vld [vmem:[#allocation2 + $0x8] sm:$0xf]
          %v375 = vld [vmem:[#allocation2 + $0xc] sm:$0xf]
          %376 = vst [vmem:[#allocation2] sm:$0xf] %v374
          %377 = vst [vmem:[#allocation2 + $0x4] sm:$0xf] %v375
          %v378 = vld [vmem:[#allocation3 + $0x8] sm:$0xf]
          %v379 = vld [vmem:[#allocation3 + $0xc] sm:$0xf]
          %380 = vst [vmem:[#allocation3] sm:$0xf] %v378
          %381 = vst [vmem:[#allocation3 + $0x4] sm:$0xf] %v379
        $region72: #{tpu_custom_call.1} parent=47 // pred_fallthru
          _
        %v382 = vld [vmem:[%s316] sm:$0xf]
        %v383 = vld [vmem:[%s316 + $0x4] sm:$0xf]
        %384 = vst [vmem:[#allocation2 + $0x8] sm:$0xf] %v382
        %385 = vst [vmem:[#allocation2 + $0xc] sm:$0xf] %v383
        %v386 = vld [vmem:[#allocation2 + $0x4] sm:$0x8]
        %v387 = vld [vmem:[#allocation2 + $0x8] sm:$0xf]
        %v388 = vld [vmem:[#allocation2 + $0xc] sm:$0x7]
        %v389 = vld [vmem:[#allocation7] sm:$0xf]
        %v390 = vld [vmem:[#allocation7 + $0x4] sm:$0xf]
        %v391 = vld [vmem:[#allocation7 + $0x8] sm:$0xf]
        %v392 = vld [vmem:[#allocation7 + $0xc] sm:$0xf]
        %v393 = vld [vmem:[#allocation7 + $0x10] sm:$0xf]
        %v394 = vld [vmem:[#allocation7 + $0x14] sm:$0xf]
        %v395 = vld [vmem:[#allocation7 + $0x18] sm:$0xf]
        %v396 = vld [vmem:[#allocation7 + $0x1c] sm:$0xf]
        %v397 = vld [vmem:[#allocation7 + $0x20] sm:$0xf]
        %v398 = vld [vmem:[#allocation7 + $0x24] sm:$0xf]
        %v399 = vld [vmem:[#allocation7 + $0x28] sm:$0xf]
        %v400 = vld [vmem:[#allocation7 + $0x2c] sm:$0xf]
        %v401 = vld [vmem:[#allocation7 + $0x30] sm:$0xf]
        %v402 = vld [vmem:[#allocation7 + $0x34] sm:$0xf]
        %v403 = vld [vmem:[#allocation7 + $0x38] sm:$0xf]
        %v404 = vld [vmem:[#allocation7 + $0x3c] sm:$0xf]
        %v405 = vld [vmem:[#allocation2 + $0xc] sm:$0xf]
        %s406 = scalar_lea.vmem [#allocation7], 64
        %v407 = vld [vmem:[%s406] sm:$0xf]
        %v408 = vld [vmem:[%s406 + $0x4] sm:$0xf]
        %v409 = vld [vmem:[%s406 + $0x8] sm:$0xf]
        %v410 = vld [vmem:[%s406 + $0xc] sm:$0xf]
        %v411 = vld [vmem:[%s406 + $0x10] sm:$0xf]
        %v412 = vld [vmem:[%s406 + $0x14] sm:$0xf]
        %v413 = vld [vmem:[%s406 + $0x18] sm:$0xf]
        %v414 = vld [vmem:[%s406 + $0x1c] sm:$0xf]
        %v415 = vld [vmem:[%s406 + $0x20] sm:$0xf]
        %v416 = vld [vmem:[%s406 + $0x24] sm:$0xf]
        %v417 = vld [vmem:[%s406 + $0x28] sm:$0xf]
        %v418 = vld [vmem:[%s406 + $0x2c] sm:$0xf]
        %v419 = vld [vmem:[%s406 + $0x30] sm:$0xf]
        %v420 = vld [vmem:[%s406 + $0x34] sm:$0xf]
        %v421 = vld [vmem:[%s406 + $0x38] sm:$0xf]
        %v422 = vld [vmem:[%s406 + $0x3c] sm:$0xf]
        %v426 = vunpack.c.l.b16 %v386
        %v427 = vunpack.c.l.b16 %v387
        %v428 = vunpack.c.l.b16 %v405
        %v429 = vpack.c.b16 %v427, %v426
        %v430 = vpack.c.b16 %v428, %v428
        %vm431 = vsmask.f32 4352
        %v433 = vshrl.u32 %v429, 16
        %v435 = vrot.slane %v433, 3
        %v436 = vshll.u32 %v429, 16
        %v438 = vrot.slane %v436, 4
        %v439 = vor.u32 %v435, %v438
        %v441 = vshrl.u32 %v430, 16
        %v443 = vrot.slane %v441, 3
        %v444 = vshll.u32 %v430, 16
        %v446 = vrot.slane %v444, 4
        %v447 = vor.u32 %v443, %v446
        %v448 = vsel %vm431, %v439, %v447
        %v466 = vunpack.c.l.b16 %v407
        %v467 = vunpack.c.l.b16 %v408
        %v468 = vunpack.c.l.b16 %v409
        %v469 = vunpack.c.l.b16 %v410
        %v470 = vunpack.c.l.b16 %v411
        %v471 = vunpack.c.l.b16 %v412
        %v472 = vunpack.c.l.b16 %v413
        %v473 = vunpack.c.l.b16 %v414
        %v474 = vunpack.c.l.b16 %v415
        %v475 = vunpack.c.l.b16 %v416
        %v476 = vunpack.c.l.b16 %v417
        %v477 = vunpack.c.l.b16 %v418
        %v478 = vunpack.c.l.b16 %v419
        %v479 = vunpack.c.l.b16 %v420
        %v480 = vunpack.c.l.b16 %v421
        %v481 = vunpack.c.l.b16 %v422
        %v482 = vpack.c.b16 %v467, %v466
        %v483 = vpack.c.b16 %v469, %v468
        %v484 = vpack.c.b16 %v471, %v470
        %v485 = vpack.c.b16 %v473, %v472
        %v486 = vpack.c.b16 %v475, %v474
        %v487 = vpack.c.b16 %v477, %v476
        %v488 = vpack.c.b16 %v479, %v478
        %v489 = vpack.c.b16 %v481, %v480
        %498 = vmatprep.subr.bf16.mxu0 0
        %499 = vmatpush1.bf16.msra.mxu0 %v489
        %500 = vmatprep.subr.bf16.mxu0 0
        %501 = vmatpush1.bf16.msra.mxu0 %v488
        %502 = vmatprep.subr.bf16.mxu0 0
        %503 = vmatpush1.bf16.msra.mxu0 %v487
        %504 = vmatprep.subr.bf16.mxu0 0
        %505 = vmatpush1.bf16.msra.mxu0 %v486
        %506 = vmatprep.subr.bf16.mxu0 0
        %507 = vmatpush1.bf16.msra.mxu0 %v485
        %508 = vmatprep.subr.bf16.mxu0 0
        %509 = vmatpush1.bf16.msra.mxu0 %v484
        %510 = vmatprep.subr.bf16.mxu0 0
        %511 = vmatpush1.bf16.msra.mxu0 %v483
        %512 = vmatprep.subr.bf16.mxu0 0
        %513 = vmatpush1.bf16.msra.mxu0 %v482
        %514 = vmatprep.subr.bf16.mxu0 0
        %515 = vmatpush2.bf16.msra.mxu0 0
        %516 = vmatprep.subr.bf16.mxu0 0
        %517 = vmatpush2.bf16.msra.mxu0 0
        %518 = vmatprep.subr.bf16.mxu0 0
        %519 = vmatpush2.bf16.msra.mxu0 0
        %520 = vmatprep.subr.bf16.mxu0 0
        %521 = vmatpush2.bf16.msra.mxu0 0
        %522 = vmatprep.subr.bf16.mxu0 0
        %523 = vmatpush2.bf16.msra.mxu0 0
        %524 = vmatprep.subr.bf16.mxu0 0
        %525 = vmatpush2.bf16.msra.mxu0 0
        %526 = vmatprep.subr.bf16.mxu0 0
        %527 = vmatpush2.bf16.msra.mxu0 0
        %528 = vmatprep.subr.bf16.mxu0 0
        %529 = vmatpush2.bf16.msra.mxu0 0
        %530 = vmatprep.mubr.bf16.mxu0 0
        %531 = vmatmul.mubr.bf16.gmra.mxu0 %v448
        %v532 = vpop.f32.mrf.mxu0
        %v533 = vadd.f32 0.0, %v532
        %v534 = vpop.f32.mrf.mxu0
        %v535 = vpop.f32.mrf.mxu0
        %v536 = vadd.f32 0.0, %v535
        %v537 = vpop.f32.mrf.mxu0
        %538 = vdwg.mxu0
        %v540 = vunpack.c.l.b16 %v388
        %v541 = vpack.c.b16 %v540, %v540
        %vm542 = vcmask 1044480
        %v543 = vrot.slane %v429, 3
        %v544 = vrot.slane %v541, 3
        %v545 = vsel %vm542, %v543, %v544
        %v563 = vunpack.c.l.b16 %v389
        %v564 = vunpack.c.l.b16 %v390
        %v565 = vunpack.c.l.b16 %v391
        %v566 = vunpack.c.l.b16 %v392
        %v567 = vunpack.c.l.b16 %v393
        %v568 = vunpack.c.l.b16 %v394
        %v569 = vunpack.c.l.b16 %v395
        %v570 = vunpack.c.l.b16 %v396
        %v571 = vunpack.c.l.b16 %v397
        %v572 = vunpack.c.l.b16 %v398
        %v573 = vunpack.c.l.b16 %v399
        %v574 = vunpack.c.l.b16 %v400
        %v575 = vunpack.c.l.b16 %v401
        %v576 = vunpack.c.l.b16 %v402
        %v577 = vunpack.c.l.b16 %v403
        %v578 = vunpack.c.l.b16 %v404
        %v579 = vpack.c.b16 %v564, %v563
        %v580 = vpack.c.b16 %v566, %v565
        %v581 = vpack.c.b16 %v568, %v567
        %v582 = vpack.c.b16 %v570, %v569
        %v583 = vpack.c.b16 %v572, %v571
        %v584 = vpack.c.b16 %v574, %v573
        %v585 = vpack.c.b16 %v576, %v575
        %v586 = vpack.c.b16 %v578, %v577
        %595 = vmatprep.subr.bf16.mxu0 0
        %596 = vmatpush1.bf16.msra.mxu0 %v586
        %597 = vmatprep.subr.bf16.mxu0 0
        %598 = vmatpush1.bf16.msra.mxu0 %v585
        %599 = vmatprep.subr.bf16.mxu0 0
        %600 = vmatpush1.bf16.msra.mxu0 %v584
        %601 = vmatprep.subr.bf16.mxu0 0
        %602 = vmatpush1.bf16.msra.mxu0 %v583
        %603 = vmatprep.subr.bf16.mxu0 0
        %604 = vmatpush1.bf16.msra.mxu0 %v582
        %605 = vmatprep.subr.bf16.mxu0 0
        %606 = vmatpush1.bf16.msra.mxu0 %v581
        %607 = vmatprep.subr.bf16.mxu0 0
        %608 = vmatpush1.bf16.msra.mxu0 %v580
        %609 = vmatprep.subr.bf16.mxu0 0
        %610 = vmatpush1.bf16.msra.mxu0 %v579
        %611 = vmatprep.subr.bf16.mxu0 0
        %612 = vmatpush2.bf16.msra.mxu0 0
        %613 = vmatprep.subr.bf16.mxu0 0
        %614 = vmatpush2.bf16.msra.mxu0 0
        %615 = vmatprep.subr.bf16.mxu0 0
        %616 = vmatpush2.bf16.msra.mxu0 0
        %617 = vmatprep.subr.bf16.mxu0 0
        %618 = vmatpush2.bf16.msra.mxu0 0
        %619 = vmatprep.subr.bf16.mxu0 0
        %620 = vmatpush2.bf16.msra.mxu0 0
        %621 = vmatprep.subr.bf16.mxu0 0
        %622 = vmatpush2.bf16.msra.mxu0 0
        %623 = vmatprep.subr.bf16.mxu0 0
        %624 = vmatpush2.bf16.msra.mxu0 0
        %625 = vmatprep.subr.bf16.mxu0 0
        %626 = vmatpush2.bf16.msra.mxu0 0
        %627 = vmatprep.mubr.bf16.mxu0 0
        %628 = vmatmul.mubr.bf16.gmra.mxu0 %v545
        %v629 = vpop.f32.mrf.mxu0
        %v630 = vadd.f32 %v533, %v629
        %v631 = vpop.f32.mrf.mxu0
        %v632 = vpop.f32.mrf.mxu0
        %v633 = vadd.f32 %v536, %v632
        %v634 = vpop.f32.mrf.mxu0
        %635 = vdwg.mxu0
        %s636 = scalar_lea.vmem [#allocation7], 128
        %v637 = vld [vmem:[%s636] sm:$0xf]
        %v638 = vld [vmem:[%s636 + $0x4] sm:$0xf]
        %v639 = vld [vmem:[%s636 + $0x8] sm:$0xf]
        %v640 = vld [vmem:[%s636 + $0xc] sm:$0xf]
        %v641 = vld [vmem:[%s636 + $0x10] sm:$0xf]
        %v642 = vld [vmem:[%s636 + $0x14] sm:$0xf]
        %v643 = vld [vmem:[%s636 + $0x18] sm:$0xf]
        %v644 = vld [vmem:[%s636 + $0x1c] sm:$0xf]
        %v645 = vld [vmem:[%s636 + $0x20] sm:$0xf]
        %v646 = vld [vmem:[%s636 + $0x24] sm:$0xf]
        %v647 = vld [vmem:[%s636 + $0x28] sm:$0xf]
        %v648 = vld [vmem:[%s636 + $0x2c] sm:$0xf]
        %v649 = vld [vmem:[%s636 + $0x30] sm:$0xf]
        %v650 = vld [vmem:[%s636 + $0x34] sm:$0xf]
        %v651 = vld [vmem:[%s636 + $0x38] sm:$0xf]
        %v652 = vld [vmem:[%s636 + $0x3c] sm:$0xf]
        %v653 = vpack.c.b16 %v428, %v427
        %v671 = vunpack.c.l.b16 %v637
        %v672 = vunpack.c.l.b16 %v638
        %v673 = vunpack.c.l.b16 %v639
        %v674 = vunpack.c.l.b16 %v640
        %v675 = vunpack.c.l.b16 %v641
        %v676 = vunpack.c.l.b16 %v642
        %v677 = vunpack.c.l.b16 %v643
        %v678 = vunpack.c.l.b16 %v644
        %v679 = vunpack.c.l.b16 %v645
        %v680 = vunpack.c.l.b16 %v646
        %v681 = vunpack.c.l.b16 %v647
        %v682 = vunpack.c.l.b16 %v648
        %v683 = vunpack.c.l.b16 %v649
        %v684 = vunpack.c.l.b16 %v650
        %v685 = vunpack.c.l.b16 %v651
        %v686 = vunpack.c.l.b16 %v652
        %v687 = vpack.c.b16 %v672, %v671
        %v688 = vpack.c.b16 %v674, %v673
        %v689 = vpack.c.b16 %v676, %v675
        %v690 = vpack.c.b16 %v678, %v677
        %v691 = vpack.c.b16 %v680, %v679
        %v692 = vpack.c.b16 %v682, %v681
        %v693 = vpack.c.b16 %v684, %v683
        %v694 = vpack.c.b16 %v686, %v685
        %703 = vmatprep.subr.bf16.mxu0 0
        %704 = vmatpush1.bf16.msra.mxu0 %v694
        %705 = vmatprep.subr.bf16.mxu0 0
        %706 = vmatpush1.bf16.msra.mxu0 %v693
        %707 = vmatprep.subr.bf16.mxu0 0
        %708 = vmatpush1.bf16.msra.mxu0 %v692
        %709 = vmatprep.subr.bf16.mxu0 0
        %710 = vmatpush1.bf16.msra.mxu0 %v691
        %711 = vmatprep.subr.bf16.mxu0 0
        %712 = vmatpush1.bf16.msra.mxu0 %v690
        %713 = vmatprep.subr.bf16.mxu0 0
        %714 = vmatpush1.bf16.msra.mxu0 %v689
        %715 = vmatprep.subr.bf16.mxu0 0
        %716 = vmatpush1.bf16.msra.mxu0 %v688
        %717 = vmatprep.subr.bf16.mxu0 0
        %718 = vmatpush1.bf16.msra.mxu0 %v687
        %719 = vmatprep.subr.bf16.mxu0 0
        %720 = vmatpush2.bf16.msra.mxu0 0
        %721 = vmatprep.subr.bf16.mxu0 0
        %722 = vmatpush2.bf16.msra.mxu0 0
        %723 = vmatprep.subr.bf16.mxu0 0
        %724 = vmatpush2.bf16.msra.mxu0 0
        %725 = vmatprep.subr.bf16.mxu0 0
        %726 = vmatpush2.bf16.msra.mxu0 0
        %727 = vmatprep.subr.bf16.mxu0 0
        %728 = vmatpush2.bf16.msra.mxu0 0
        %729 = vmatprep.subr.bf16.mxu0 0
        %730 = vmatpush2.bf16.msra.mxu0 0
        %731 = vmatprep.subr.bf16.mxu0 0
        %732 = vmatpush2.bf16.msra.mxu0 0
        %733 = vmatprep.subr.bf16.mxu0 0
        %734 = vmatpush2.bf16.msra.mxu0 0
        %735 = vmatprep.mubr.bf16.mxu0 0
        %736 = vmatmul.mubr.bf16.gmra.mxu0 %v653
        %v737 = vpop.f32.mrf.mxu0
        %v738 = vadd.f32 0.0, %v737
        %v739 = vpop.f32.mrf.mxu0
        %v740 = vpop.f32.mrf.mxu0
        %v741 = vadd.f32 0.0, %v740
        %v742 = vpop.f32.mrf.mxu0
        %743 = vdwg.mxu0
        %v744 = vadd.f32 %v630, %v738
        %v745 = vadd.f32 %v633, %v741
        %v746 = vld [vmem:[%s2] sm:$0x1]
        %v748 = vlaneseq
        %v749 = vshrl.u32 %v748, 7
        %v750 = vsub.s32 0, %v749
        %v751 = vrot.slane %v746, %v750
        %v753 = vadd.f32 %v744, %v751
        %v754 = vadd.f32 %v745, %v751
        %v755 = vmax.f32 %v753, 0.0
        %v756 = vmax.f32 %v754, 0.0
        %v757 = vpack.c.bf16 %v756, %v755
        %v759 = vunpack.c.l.b16 %v757
        %v760 = vunpack.c.h.b16 %v757
        %v761 = vpack.c.b16 %v759, %v759
        %v762 = vpack.c.b16 %v760, %v760
        %765 = vst [vmem:[#allocation3 + $0x8] sm:$0xf] %v761
        %766 = vst [vmem:[#allocation3 + $0xc] sm:$0xf] %v762
        %v767 = vld [vmem:[#allocation3 + $0x4] sm:$0x8]
        %v768 = vld [vmem:[#allocation3 + $0x8] sm:$0xf]
        %v769 = vld [vmem:[#allocation3 + $0xc] sm:$0x7]
        %v770 = vld [vmem:[#allocation9] sm:$0xf]
        %v771 = vld [vmem:[#allocation9 + $0x4] sm:$0xf]
        %v772 = vld [vmem:[#allocation9 + $0x8] sm:$0xf]
        %v773 = vld [vmem:[#allocation9 + $0xc] sm:$0xf]
        %v774 = vld [vmem:[#allocation9 + $0x10] sm:$0xf]
        %v775 = vld [vmem:[#allocation9 + $0x14] sm:$0xf]
        %v776 = vld [vmem:[#allocation9 + $0x18] sm:$0xf]
        %v777 = vld [vmem:[#allocation9 + $0x1c] sm:$0xf]
        %v778 = vld [vmem:[#allocation9 + $0x20] sm:$0xf]
        %v779 = vld [vmem:[#allocation9 + $0x24] sm:$0xf]
        %v780 = vld [vmem:[#allocation9 + $0x28] sm:$0xf]
        %v781 = vld [vmem:[#allocation9 + $0x2c] sm:$0xf]
        %v782 = vld [vmem:[#allocation9 + $0x30] sm:$0xf]
        %v783 = vld [vmem:[#allocation9 + $0x34] sm:$0xf]
        %v784 = vld [vmem:[#allocation9 + $0x38] sm:$0xf]
        %v785 = vld [vmem:[#allocation9 + $0x3c] sm:$0xf]
        %v786 = vld [vmem:[#allocation3 + $0xc] sm:$0xf]
        %s787 = scalar_lea.vmem [#allocation9], 64
        %v788 = vld [vmem:[%s787] sm:$0xf]
        %v789 = vld [vmem:[%s787 + $0x4] sm:$0xf]
        %v790 = vld [vmem:[%s787 + $0x8] sm:$0xf]
        %v791 = vld [vmem:[%s787 + $0xc] sm:$0xf]
        %v792 = vld [vmem:[%s787 + $0x10] sm:$0xf]
        %v793 = vld [vmem:[%s787 + $0x14] sm:$0xf]
        %v794 = vld [vmem:[%s787 + $0x18] sm:$0xf]
        %v795 = vld [vmem:[%s787 + $0x1c] sm:$0xf]
        %v796 = vld [vmem:[%s787 + $0x20] sm:$0xf]
        %v797 = vld [vmem:[%s787 + $0x24] sm:$0xf]
        %v798 = vld [vmem:[%s787 + $0x28] sm:$0xf]
        %v799 = vld [vmem:[%s787 + $0x2c] sm:$0xf]
        %v800 = vld [vmem:[%s787 + $0x30] sm:$0xf]
        %v801 = vld [vmem:[%s787 + $0x34] sm:$0xf]
        %v802 = vld [vmem:[%s787 + $0x38] sm:$0xf]
        %v803 = vld [vmem:[%s787 + $0x3c] sm:$0xf]
        %v807 = vunpack.c.l.b16 %v767
        %v808 = vunpack.c.l.b16 %v768
        %v809 = vunpack.c.l.b16 %v786
        %v810 = vpack.c.b16 %v808, %v807
        %v811 = vpack.c.b16 %v809, %v809
        %v813 = vshrl.u32 %v810, 16
        %v815 = vrot.slane %v813, 3
        %v816 = vshll.u32 %v810, 16
        %v818 = vrot.slane %v816, 4
        %v819 = vor.u32 %v815, %v818
        %v821 = vshrl.u32 %v811, 16
        %v823 = vrot.slane %v821, 3
        %v824 = vshll.u32 %v811, 16
        %v826 = vrot.slane %v824, 4
        %v827 = vor.u32 %v823, %v826
        %v828 = vsel %vm431, %v819, %v827
        %v846 = vunpack.c.l.b16 %v788
        %v847 = vunpack.c.l.b16 %v789
        %v848 = vunpack.c.l.b16 %v790
        %v849 = vunpack.c.l.b16 %v791
        %v850 = vunpack.c.l.b16 %v792
        %v851 = vunpack.c.l.b16 %v793
        %v852 = vunpack.c.l.b16 %v794
        %v853 = vunpack.c.l.b16 %v795
        %v854 = vunpack.c.l.b16 %v796
        %v855 = vunpack.c.l.b16 %v797
        %v856 = vunpack.c.l.b16 %v798
        %v857 = vunpack.c.l.b16 %v799
        %v858 = vunpack.c.l.b16 %v800
        %v859 = vunpack.c.l.b16 %v801
        %v860 = vunpack.c.l.b16 %v802
        %v861 = vunpack.c.l.b16 %v803
        %v862 = vpack.c.b16 %v847, %v846
        %v863 = vpack.c.b16 %v849, %v848
        %v864 = vpack.c.b16 %v851, %v850
        %v865 = vpack.c.b16 %v853, %v852
        %v866 = vpack.c.b16 %v855, %v854
        %v867 = vpack.c.b16 %v857, %v856
        %v868 = vpack.c.b16 %v859, %v858
        %v869 = vpack.c.b16 %v861, %v860
        %878 = vmatprep.subr.bf16.mxu0 0
        %879 = vmatpush1.bf16.msra.mxu0 %v869
        %880 = vmatprep.subr.bf16.mxu0 0
        %881 = vmatpush1.bf16.msra.mxu0 %v868
        %882 = vmatprep.subr.bf16.mxu0 0
        %883 = vmatpush1.bf16.msra.mxu0 %v867
        %884 = vmatprep.subr.bf16.mxu0 0
        %885 = vmatpush1.bf16.msra.mxu0 %v866
        %886 = vmatprep.subr.bf16.mxu0 0
        %887 = vmatpush1.bf16.msra.mxu0 %v865
        %888 = vmatprep.subr.bf16.mxu0 0
        %889 = vmatpush1.bf16.msra.mxu0 %v864
        %890 = vmatprep.subr.bf16.mxu0 0
        %891 = vmatpush1.bf16.msra.mxu0 %v863
        %892 = vmatprep.subr.bf16.mxu0 0
        %893 = vmatpush1.bf16.msra.mxu0 %v862
        %894 = vmatprep.subr.bf16.mxu0 0
        %895 = vmatpush2.bf16.msra.mxu0 0
        %896 = vmatprep.subr.bf16.mxu0 0
        %897 = vmatpush2.bf16.msra.mxu0 0
        %898 = vmatprep.subr.bf16.mxu0 0
        %899 = vmatpush2.bf16.msra.mxu0 0
        %900 = vmatprep.subr.bf16.mxu0 0
        %901 = vmatpush2.bf16.msra.mxu0 0
        %902 = vmatprep.subr.bf16.mxu0 0
        %903 = vmatpush2.bf16.msra.mxu0 0
        %904 = vmatprep.subr.bf16.mxu0 0
        %905 = vmatpush2.bf16.msra.mxu0 0
        %906 = vmatprep.subr.bf16.mxu0 0
        %907 = vmatpush2.bf16.msra.mxu0 0
        %908 = vmatprep.subr.bf16.mxu0 0
        %909 = vmatpush2.bf16.msra.mxu0 0
        %910 = vmatprep.mubr.bf16.mxu0 0
        %911 = vmatmul.mubr.bf16.gmra.mxu0 %v828
        %v912 = vpop.f32.mrf.mxu0
        %v913 = vadd.f32 0.0, %v912
        %v914 = vpop.f32.mrf.mxu0
        %v915 = vpop.f32.mrf.mxu0
        %v916 = vadd.f32 0.0, %v915
        %v917 = vpop.f32.mrf.mxu0
        %918 = vdwg.mxu0
        %v920 = vunpack.c.l.b16 %v769
        %v921 = vpack.c.b16 %v920, %v920
        %v922 = vrot.slane %v810, 3
        %v923 = vrot.slane %v921, 3
        %v924 = vsel %vm542, %v922, %v923
        %v942 = vunpack.c.l.b16 %v770
        %v943 = vunpack.c.l.b16 %v771
        %v944 = vunpack.c.l.b16 %v772
        %v945 = vunpack.c.l.b16 %v773
        %v946 = vunpack.c.l.b16 %v774
        %v947 = vunpack.c.l.b16 %v775
        %v948 = vunpack.c.l.b16 %v776
        %v949 = vunpack.c.l.b16 %v777
        %v950 = vunpack.c.l.b16 %v778
        %v951 = vunpack.c.l.b16 %v779
        %v952 = vunpack.c.l.b16 %v780
        %v953 = vunpack.c.l.b16 %v781
        %v954 = vunpack.c.l.b16 %v782
        %v955 = vunpack.c.l.b16 %v783
        %v956 = vunpack.c.l.b16 %v784
        %v957 = vunpack.c.l.b16 %v785
        %v958 = vpack.c.b16 %v943, %v942
        %v959 = vpack.c.b16 %v945, %v944
        %v960 = vpack.c.b16 %v947, %v946
        %v961 = vpack.c.b16 %v949, %v948
        %v962 = vpack.c.b16 %v951, %v950
        %v963 = vpack.c.b16 %v953, %v952
        %v964 = vpack.c.b16 %v955, %v954
        %v965 = vpack.c.b16 %v957, %v956
        %974 = vmatprep.subr.bf16.mxu0 0
        %975 = vmatpush1.bf16.msra.mxu0 %v965
        %976 = vmatprep.subr.bf16.mxu0 0
        %977 = vmatpush1.bf16.msra.mxu0 %v964
        %978 = vmatprep.subr.bf16.mxu0 0
        %979 = vmatpush1.bf16.msra.mxu0 %v963
        %980 = vmatprep.subr.bf16.mxu0 0
        %981 = vmatpush1.bf16.msra.mxu0 %v962
        %982 = vmatprep.subr.bf16.mxu0 0
        %983 = vmatpush1.bf16.msra.mxu0 %v961
        %984 = vmatprep.subr.bf16.mxu0 0
        %985 = vmatpush1.bf16.msra.mxu0 %v960
        %986 = vmatprep.subr.bf16.mxu0 0
        %987 = vmatpush1.bf16.msra.mxu0 %v959
        %988 = vmatprep.subr.bf16.mxu0 0
        %989 = vmatpush1.bf16.msra.mxu0 %v958
        %990 = vmatprep.subr.bf16.mxu0 0
        %991 = vmatpush2.bf16.msra.mxu0 0
        %992 = vmatprep.subr.bf16.mxu0 0
        %993 = vmatpush2.bf16.msra.mxu0 0
        %994 = vmatprep.subr.bf16.mxu0 0
        %995 = vmatpush2.bf16.msra.mxu0 0
        %996 = vmatprep.subr.bf16.mxu0 0
        %997 = vmatpush2.bf16.msra.mxu0 0
        %998 = vmatprep.subr.bf16.mxu0 0
        %999 = vmatpush2.bf16.msra.mxu0 0
        %1000 = vmatprep.subr.bf16.mxu0 0
        %1001 = vmatpush2.bf16.msra.mxu0 0
        %1002 = vmatprep.subr.bf16.mxu0 0
        %1003 = vmatpush2.bf16.msra.mxu0 0
        %1004 = vmatprep.subr.bf16.mxu0 0
        %1005 = vmatpush2.bf16.msra.mxu0 0
        %1006 = vmatprep.mubr.bf16.mxu0 0
        %1007 = vmatmul.mubr.bf16.gmra.mxu0 %v924
        %v1008 = vpop.f32.mrf.mxu0
        %v1009 = vadd.f32 %v913, %v1008
        %v1010 = vpop.f32.mrf.mxu0
        %v1011 = vpop.f32.mrf.mxu0
        %v1012 = vadd.f32 %v916, %v1011
        %v1013 = vpop.f32.mrf.mxu0
        %1014 = vdwg.mxu0
        %s1015 = scalar_lea.vmem [#allocation9], 128
        %v1016 = vld [vmem:[%s1015] sm:$0xf]
        %v1017 = vld [vmem:[%s1015 + $0x4] sm:$0xf]
        %v1018 = vld [vmem:[%s1015 + $0x8] sm:$0xf]
        %v1019 = vld [vmem:[%s1015 + $0xc] sm:$0xf]
        %v1020 = vld [vmem:[%s1015 + $0x10] sm:$0xf]
        %v1021 = vld [vmem:[%s1015 + $0x14] sm:$0xf]
        %v1022 = vld [vmem:[%s1015 + $0x18] sm:$0xf]
        %v1023 = vld [vmem:[%s1015 + $0x1c] sm:$0xf]
        %v1024 = vld [vmem:[%s1015 + $0x20] sm:$0xf]
        %v1025 = vld [vmem:[%s1015 + $0x24] sm:$0xf]
        %v1026 = vld [vmem:[%s1015 + $0x28] sm:$0xf]
        %v1027 = vld [vmem:[%s1015 + $0x2c] sm:$0xf]
        %v1028 = vld [vmem:[%s1015 + $0x30] sm:$0xf]
        %v1029 = vld [vmem:[%s1015 + $0x34] sm:$0xf]
        %v1030 = vld [vmem:[%s1015 + $0x38] sm:$0xf]
        %v1031 = vld [vmem:[%s1015 + $0x3c] sm:$0xf]
        %v1032 = vpack.c.b16 %v809, %v808
        %v1050 = vunpack.c.l.b16 %v1016
        %v1051 = vunpack.c.l.b16 %v1017
        %v1052 = vunpack.c.l.b16 %v1018
        %v1053 = vunpack.c.l.b16 %v1019
        %v1054 = vunpack.c.l.b16 %v1020
        %v1055 = vunpack.c.l.b16 %v1021
        %v1056 = vunpack.c.l.b16 %v1022
        %v1057 = vunpack.c.l.b16 %v1023
        %v1058 = vunpack.c.l.b16 %v1024
        %v1059 = vunpack.c.l.b16 %v1025
        %v1060 = vunpack.c.l.b16 %v1026
        %v1061 = vunpack.c.l.b16 %v1027
        %v1062 = vunpack.c.l.b16 %v1028
        %v1063 = vunpack.c.l.b16 %v1029
        %v1064 = vunpack.c.l.b16 %v1030
        %v1065 = vunpack.c.l.b16 %v1031
        %v1066 = vpack.c.b16 %v1051, %v1050
        %v1067 = vpack.c.b16 %v1053, %v1052
        %v1068 = vpack.c.b16 %v1055, %v1054
        %v1069 = vpack.c.b16 %v1057, %v1056
        %v1070 = vpack.c.b16 %v1059, %v1058
        %v1071 = vpack.c.b16 %v1061, %v1060
        %v1072 = vpack.c.b16 %v1063, %v1062
        %v1073 = vpack.c.b16 %v1065, %v1064
        %1082 = vmatprep.subr.bf16.mxu0 0
        %1083 = vmatpush1.bf16.msra.mxu0 %v1073
        %1084 = vmatprep.subr.bf16.mxu0 0
        %1085 = vmatpush1.bf16.msra.mxu0 %v1072
        %1086 = vmatprep.subr.bf16.mxu0 0
        %1087 = vmatpush1.bf16.msra.mxu0 %v1071
        %1088 = vmatprep.subr.bf16.mxu0 0
        %1089 = vmatpush1.bf16.msra.mxu0 %v1070
        %1090 = vmatprep.subr.bf16.mxu0 0
        %1091 = vmatpush1.bf16.msra.mxu0 %v1069
        %1092 = vmatprep.subr.bf16.mxu0 0
        %1093 = vmatpush1.bf16.msra.mxu0 %v1068
        %1094 = vmatprep.subr.bf16.mxu0 0
        %1095 = vmatpush1.bf16.msra.mxu0 %v1067
        %1096 = vmatprep.subr.bf16.mxu0 0
        %1097 = vmatpush1.bf16.msra.mxu0 %v1066
        %1098 = vmatprep.subr.bf16.mxu0 0
        %1099 = vmatpush2.bf16.msra.mxu0 0
        %1100 = vmatprep.subr.bf16.mxu0 0
        %1101 = vmatpush2.bf16.msra.mxu0 0
        %1102 = vmatprep.subr.bf16.mxu0 0
        %1103 = vmatpush2.bf16.msra.mxu0 0
        %1104 = vmatprep.subr.bf16.mxu0 0
        %1105 = vmatpush2.bf16.msra.mxu0 0
        %1106 = vmatprep.subr.bf16.mxu0 0
        %1107 = vmatpush2.bf16.msra.mxu0 0
        %1108 = vmatprep.subr.bf16.mxu0 0
        %1109 = vmatpush2.bf16.msra.mxu0 0
        %1110 = vmatprep.subr.bf16.mxu0 0
        %1111 = vmatpush2.bf16.msra.mxu0 0
        %1112 = vmatprep.subr.bf16.mxu0 0
        %1113 = vmatpush2.bf16.msra.mxu0 0
        %1114 = vmatprep.mubr.bf16.mxu0 0
        %1115 = vmatmul.mubr.bf16.gmra.mxu0 %v1032
        %v1116 = vpop.f32.mrf.mxu0
        %v1117 = vadd.f32 0.0, %v1116
        %v1118 = vpop.f32.mrf.mxu0
        %v1119 = vpop.f32.mrf.mxu0
        %v1120 = vadd.f32 0.0, %v1119
        %v1121 = vpop.f32.mrf.mxu0
        %1122 = vdwg.mxu0
        %v1123 = vadd.f32 %v1009, %v1117
        %v1124 = vadd.f32 %v1012, %v1120
        %v1125 = vld [vmem:[%s4] sm:$0x1]
        %v1127 = vlaneseq
        %v1128 = vshrl.u32 %v1127, 7
        %v1129 = vsub.s32 0, %v1128
        %v1130 = vrot.slane %v1125, %v1129
        %v1132 = vadd.f32 %v1123, %v1130
        %v1133 = vadd.f32 %v1124, %v1130
        %v1134 = vmax.f32 %v1132, 0.0
        %v1135 = vmax.f32 %v1133, 0.0
        %v1136 = vld [vmem:[%s316] sm:$0xf]
        %v1137 = vld [vmem:[%s316 + $0x4] sm:$0xf]
        %v1138 = vld [vmem:[#allocation10] sm:$0xf]
        %v1139 = vld [vmem:[#allocation10 + $0x4] sm:$0xf]
        %v1140 = vld [vmem:[#allocation10 + $0x8] sm:$0xf]
        %v1141 = vld [vmem:[#allocation10 + $0xc] sm:$0xf]
        %v1142 = vld [vmem:[#allocation10 + $0x10] sm:$0xf]
        %v1143 = vld [vmem:[#allocation10 + $0x14] sm:$0xf]
        %v1144 = vld [vmem:[#allocation10 + $0x18] sm:$0xf]
        %v1145 = vld [vmem:[#allocation10 + $0x1c] sm:$0xf]
        %v1146 = vld [vmem:[#allocation10 + $0x20] sm:$0xf]
        %v1147 = vld [vmem:[#allocation10 + $0x24] sm:$0xf]
        %v1148 = vld [vmem:[#allocation10 + $0x28] sm:$0xf]
        %v1149 = vld [vmem:[#allocation10 + $0x2c] sm:$0xf]
        %v1150 = vld [vmem:[#allocation10 + $0x30] sm:$0xf]
        %v1151 = vld [vmem:[#allocation10 + $0x34] sm:$0xf]
        %v1152 = vld [vmem:[#allocation10 + $0x38] sm:$0xf]
        %v1153 = vld [vmem:[#allocation10 + $0x3c] sm:$0xf]
        %v1154 = vld [vmem:[%s6] sm:$0x1]
        %v1156 = vlaneseq
        %v1157 = vshrl.u32 %v1156, 7
        %v1158 = vsub.s32 0, %v1157
        %v1159 = vrot.slane %v1154, %v1158
        %v1163 = vunpack.c.l.b16 %v1136
        %v1164 = vunpack.c.l.b16 %v1137
        %v1165 = vpack.c.b16 %v1164, %v1163
        %v1183 = vunpack.c.l.b16 %v1138
        %v1184 = vunpack.c.l.b16 %v1139
        %v1185 = vunpack.c.l.b16 %v1140
        %v1186 = vunpack.c.l.b16 %v1141
        %v1187 = vunpack.c.l.b16 %v1142
        %v1188 = vunpack.c.l.b16 %v1143
        %v1189 = vunpack.c.l.b16 %v1144
        %v1190 = vunpack.c.l.b16 %v1145
        %v1191 = vunpack.c.l.b16 %v1146
        %v1192 = vunpack.c.l.b16 %v1147
        %v1193 = vunpack.c.l.b16 %v1148
        %v1194 = vunpack.c.l.b16 %v1149
        %v1195 = vunpack.c.l.b16 %v1150
        %v1196 = vunpack.c.l.b16 %v1151
        %v1197 = vunpack.c.l.b16 %v1152
        %v1198 = vunpack.c.l.b16 %v1153
        %v1199 = vpack.c.b16 %v1184, %v1183
        %v1200 = vpack.c.b16 %v1186, %v1185
        %v1201 = vpack.c.b16 %v1188, %v1187
        %v1202 = vpack.c.b16 %v1190, %v1189
        %v1203 = vpack.c.b16 %v1192, %v1191
        %v1204 = vpack.c.b16 %v1194, %v1193
        %v1205 = vpack.c.b16 %v1196, %v1195
        %v1206 = vpack.c.b16 %v1198, %v1197
        %1215 = vmatprep.subr.bf16.mxu0 0
        %1216 = vmatpush1.bf16.msra.mxu0 %v1206
        %1217 = vmatprep.subr.bf16.mxu0 0
        %1218 = vmatpush1.bf16.msra.mxu0 %v1205
        %1219 = vmatprep.subr.bf16.mxu0 0
        %1220 = vmatpush1.bf16.msra.mxu0 %v1204
        %1221 = vmatprep.subr.bf16.mxu0 0
        %1222 = vmatpush1.bf16.msra.mxu0 %v1203
        %1223 = vmatprep.subr.bf16.mxu0 0
        %1224 = vmatpush1.bf16.msra.mxu0 %v1202
        %1225 = vmatprep.subr.bf16.mxu0 0
        %1226 = vmatpush1.bf16.msra.mxu0 %v1201
        %1227 = vmatprep.subr.bf16.mxu0 0
        %1228 = vmatpush1.bf16.msra.mxu0 %v1200
        %1229 = vmatprep.subr.bf16.mxu0 0
        %1230 = vmatpush1.bf16.msra.mxu0 %v1199
        %1231 = vmatprep.subr.bf16.mxu0 0
        %1232 = vmatpush2.bf16.msra.mxu0 0
        %1233 = vmatprep.subr.bf16.mxu0 0
        %1234 = vmatpush2.bf16.msra.mxu0 0
        %1235 = vmatprep.subr.bf16.mxu0 0
        %1236 = vmatpush2.bf16.msra.mxu0 0
        %1237 = vmatprep.subr.bf16.mxu0 0
        %1238 = vmatpush2.bf16.msra.mxu0 0
        %1239 = vmatprep.subr.bf16.mxu0 0
        %1240 = vmatpush2.bf16.msra.mxu0 0
        %1241 = vmatprep.subr.bf16.mxu0 0
        %1242 = vmatpush2.bf16.msra.mxu0 0
        %1243 = vmatprep.subr.bf16.mxu0 0
        %1244 = vmatpush2.bf16.msra.mxu0 0
        %1245 = vmatprep.subr.bf16.mxu0 0
        %1246 = vmatpush2.bf16.msra.mxu0 0
        %1247 = vmatprep.mubr.bf16.mxu0 0
        %1248 = vmatmul.mubr.bf16.gmra.mxu0 %v1165
        %v1249 = vpop.f32.mrf.mxu0
        %v1250 = vadd.f32 %v1159, %v1249
        %v1251 = vpop.f32.mrf.mxu0
        %v1252 = vpop.f32.mrf.mxu0
        %v1253 = vadd.f32 %v1159, %v1252
        %v1254 = vpop.f32.mrf.mxu0
        %1255 = vdwg.mxu0
        %v1256 = vadd.f32 %v1134, %v1250
        %v1257 = vadd.f32 %v1135, %v1253
        %v1258 = vmax.f32 %v1256, 0.0
        %v1259 = vmax.f32 %v1257, 0.0
        %v1260 = vpack.c.bf16 %v1259, %v1258
        %v1262 = vunpack.c.l.b16 %v1260
        %v1263 = vunpack.c.h.b16 %v1260
        %v1264 = vpack.c.b16 %v1262, %v1262
        %v1265 = vpack.c.b16 %v1263, %v1263
        %1268 = vst [vmem:[%s358] sm:$0xf] %v1264
        %1269 = vst [vmem:[%s358 + $0x4] sm:$0xf] %v1265
        %s1270 = sand.u32 %s202, 1
        %s1271 = scalar_lea.sflag [#allocation6], %s1270
        %s1272 = sand.u32 %s202, 1
        %s1273 = smul.addr %s1272, 8
        %s1274 = scalar_lea.vmem [#allocation12], %s1273
        // Predicated region
        $region73: #{tpu_custom_call.1} parent=47 // pred_check
          %p1275 = pneg %p212
        $region74: #{tpu_custom_call.1} parent=47 // pred_check_branch
          %1277 = sbr.rel (%p1275) target = $region76
        $region75: #{tpu_custom_call.1} parent=47 // pred_region
          %s1278 = smul.u32 2, %s31
          %s1280 = ssub.s32 128, 128
          %1281 = vsyncadd %s1271, %s1280
          %s1282 = smul.addr %s30, 6
          %s1283 = sadd.s32 %s1278, %s1282
          %s1284 = smul.addr %s1283, 64
          %s1285 = scalar_lea.hbm %s7, %s1284
          %s1286 = sshll.u32 %s1274, 4
          %s1287 = int_to_ptr.vmem [resolvable:$true] %s1286
          %1292 = dma.vmem_to_hbm [thread:$0]  %s1287, 128, %s1285, %s1271, 64, 64, 4
        $region76: #{tpu_custom_call.1} parent=47 // pred_fallthru
          _
      $region48: #{tpu_custom_call.1} parent=5 // pred_fallthru
        _
      %p1293 = scmp.le.s32.totalorder 2, %s21
      // Predicated region
      $region77: #{tpu_custom_call.1} parent=5 // pred_check
        %p1294 = pneg %p1293
      $region78: #{tpu_custom_call.1} parent=5 // pred_check_branch
        %1296 = sbr.rel (%p1294) target = $region80
      $region79: #{tpu_custom_call.1} parent=5 // pred_region
        %s1297 = ssub.s32 %s21, 2
        // Predicated region
        $region81: #{tpu_custom_call.1} parent=79 // pred_check
          %p1298 = pneg %p218
        $region82: #{tpu_custom_call.1} parent=79 // pred_check_branch
          %1300 = sbr.rel (%p1298) target = $region84
        $region83: #{tpu_custom_call.1} parent=79 // pred_region
          %s1301 = sand.u32 %s203, 1
          %s1302 = scalar_lea.sflag [#allocation6], %s1301
          %s1303 = sand.u32 %s203, 1
          %s1304 = smul.addr %s1303, 8
          %s1305 = scalar_lea.vmem [#allocation12], %s1304
          %1306 = dma.done %s1302, 128
        $region84: #{tpu_custom_call.1} parent=79 // pred_fallthru
          _
      $region80: #{tpu_custom_call.1} parent=5 // pred_fallthru
        _
    $region6: #{tpu_custom_call.1} parent=1 // loop_footer
      %s25 = sadd.s32 1, %s21
    $region7: #{tpu_custom_call.1} parent=1 // loop_footer_branch
      %20 = sbr.rel target = $region3
    $region8: #{tpu_custom_call.1} parent=1 // loop_exit
      _
    %1307 = vsyncpa [#allocation5], 1
    %s1308 = scalar_lea.sflag [#allocation5], 1
    %1309 = vsyncpa %s1308, 1
    %1310 = vsyncpa [#allocation8], 1
    %1311 = vsyncpa [#allocation11], 1
    %1312 = vsyncpa [#allocation6], 1
    %s1313 = scalar_lea.sflag [#allocation6], 1
    %1314 = vsyncpa %s1313, 1

</llo_original>
